<compile_context>
chip_gen: v7x
topology: tpu7x:2x2x1
jax: 0.10.0
libtpu: 0.0.40
codegen_flags: <defaults>
</compile_context>

<pallas_src>
import math

import jax
import jax.numpy as jnp
from jax import lax
from jax.experimental import pallas as pl
from jax.experimental.pallas import tpu as pltpu

# ---------------- configuration (small, consistent with the module) -----------
B = 2                    # batch
H, W = 8, 8              # shape2d
EMB = 32                 # embedding_dims
HEAD_CH = 8              # head_channels
NUM_HEADS = EMB // HEAD_CH
N = H * W                # num_embeddings
NUM_GROUPS = 8           # TODO(synk): get_norm undefined in reference; assumed nn.GroupNorm(8, C, eps=1e-5)
CG = EMB // NUM_GROUPS
EPS = 1e-5
SCALE = 1.0 / math.sqrt(HEAD_CH)
RELATIVE_ENCODING = True
NEG_INF = -1e9           # cross-batch mask value (finite -> no NaNs after exp)


# ---------------- Pallas kernel -----------------------------------------------
def self_attention_kernel(x_ref, gamma_ref, beta_ref, wqkv_ref, bqkv_ref,
                          wp_ref, bp_ref, gm2_ref, sel_ref, selT_ref, rel_ref,
                          o_ref):
    bb, c, n = x_ref.shape           # (B, C, N)
    t = bb * n                       # lane-dense token count (B*N = 128)
    num_heads = rel_ref.shape[0] // t
    dh = c // num_heads

    # ---- pack batch into the lane axis: (C, B*N) slab ------------------------
    # (static B=2 unroll; fold into a grid axis / fori_loop if B ever grows)
    xb = jnp.concatenate([x_ref[i] for i in range(bb)], axis=1).astype(jnp.float32)

    # ---- GroupNorm (per-batch statistics via selector matmuls, all f32) ------
    gamma = gamma_ref[...]                                   # (C, 1)
    beta = beta_ref[...]                                     # (C, 1)
    # per-(channel, batch) sums of x and x^2 in one matmul: (2C, T) @ (T, B)
    moments = jnp.dot(jnp.concatenate([xb, xb * xb], axis=0), sel_ref[...],
                      preferred_element_type=jnp.float32)    # (2C, B)
    # group combine (+ 1/(CG*N)) for both moments in one block-diag matmul
    stats = jnp.dot(gm2_ref[...], moments,
                    preferred_element_type=jnp.float32)      # (2C, B): [mean ; E[x^2]]
    mu, ex2 = stats[:c], stats[c:]
    rstd = lax.rsqrt(ex2 - mu * mu + EPS)                    # (C, B)
    scl = rstd * gamma                                       # (C, B)
    sft = beta - mu * scl                                    # (C, B)
    # broadcast per-batch scale/shift back to the slab: (2C, B) @ (B, T)
    ss = jnp.dot(jnp.concatenate([scl, sft], axis=0), selT_ref[...],
                 preferred_element_type=jnp.float32)         # (2C, T)
    xn = xb * ss[:c] + ss[c:]                                # (C, T) normalized tokens

    # ---- fused 1x1-conv QKV projection (bf16 operands, f32 accumulate) -------
    qkv = jnp.dot(wqkv_ref[...], xn.astype(jnp.bfloat16),
                  preferred_element_type=jnp.float32) + bqkv_ref[...]   # (3C, T)
    qkv16 = qkv.astype(jnp.bfloat16)

    # ---- phase 1: all head score matmuls back-to-back ------------------------
    scores = [
        lax.dot_general(qkv16[h * dh:(h + 1) * dh, :],           # q_h (Dh, T)
                        qkv16[c + h * dh:c + (h + 1) * dh, :],   # k_h (Dh, T)
                        (((0,), (0,)), ((), ())),
                        preferred_element_type=jnp.float32)      # (T, T)
        for h in range(num_heads)
    ]
    att = jnp.concatenate(scores, axis=0)                        # (heads*T, T)

    # ---- phase 2: single fused bias/mask/softmax pass over the stack ---------
    att = att + rel_ref[...].astype(jnp.float32)   # rel bias + cross-batch -1e9 mask
    att = att - jnp.max(att, axis=-1, keepdims=True)
    p = jnp.exp(att)
    p = p * pl.reciprocal(jnp.sum(p, axis=-1, keepdims=True), approx=True)
    p16 = p.astype(jnp.bfloat16)

    # ---- phase 3: P@V per head, stacked in-register, single projection -------
    outs = [
        lax.dot_general(qkv16[2 * c + h * dh:2 * c + (h + 1) * dh, :],  # v_h (Dh, T)
                        p16[h * t:(h + 1) * t, :],                      # p_h (T, T)
                        (((1,), (1,)), ((), ())),
                        preferred_element_type=jnp.float32)             # (Dh, T)
        for h in range(num_heads)
    ]
    out_all = jnp.concatenate(outs, axis=0).astype(jnp.bfloat16)        # (C, T)

    proj = jnp.dot(wp_ref[...], out_all,
                   preferred_element_type=jnp.float32) + bp_ref[...]    # (C, T)
    y = proj + xb                                                       # residual (raw input)

    for i in range(bb):
        o_ref[i] = y[:, i * n:(i + 1) * n].astype(o_ref.dtype)


# ---------------- parameter preparation ----------------------------------------
def prepare_kernel_params(params, n, b):
    # Fuse QKV weights/biases, fold the attention scale into the Q rows,
    # store MXU weights in bf16 (accumulation stays f32 in-kernel).
    wq = params["wq"] * SCALE
    bq = params["bq"] * SCALE
    wqkv = jnp.concatenate([wq, params["wk"], params["wv"]], axis=0).astype(jnp.bfloat16)  # (3C, C)
    bqkv = jnp.concatenate([bq, params["bk"], params["bv"]], axis=0)[:, None]              # (3C, 1) f32

    # Group-mean matrix (group combine incl. 1/(CG*N)), block-diag doubled so one
    # matmul handles both the sum and the sum-of-squares columns.
    gid = jnp.arange(EMB) // CG
    gm = (gid[:, None] == gid[None, :]).astype(jnp.float32) / float(CG * n)                # (C, C)
    gm2 = jnp.zeros((2 * EMB, 2 * EMB), jnp.float32)
    gm2 = gm2.at[:EMB, :EMB].set(gm).at[EMB:, EMB:].set(gm)                                # (2C, 2C)

    # Batch selector matrices for per-batch GroupNorm stats on the (C, B*N) slab.
    bid = jnp.repeat(jnp.arange(b), n)                                                     # (B*N,)
    sel = (bid[None, :] == jnp.arange(b)[:, None]).astype(jnp.float32)                     # (B, B*N)

    return {
        "gamma": params["gamma"][:, None],
        "beta": params["beta"][:, None],
        "wqkv": wqkv, "bqkv": bqkv,
        "wp": params["wp"].astype(jnp.bfloat16), "bp": params["bp"][:, None],
        "gm2": gm2, "sel": sel.T, "selT": sel,
    }


# ---------------- relative position encoding (parameter setup, plain JAX) -----
def relative_indices(h, w):
    y = jnp.arange(h)
    x = jnp.arange(w)
    y1, x1, y2, x2 = jnp.meshgrid(y, x, y, x, indexing='ij')
    idx = (y1 - y2 + h - 1) * (2 * w - 1) + (x1 - x2) + (w - 1)
    return idx.reshape(-1)                                    # (N*N,)


def relative_bias(pos_enc, h, w):
    idx = relative_indices(h, w)
    gathered = pos_enc[:, idx]                                # (heads, N*N)
    return gathered.reshape(pos_enc.shape[0], h * w, h * w)   # (heads, N, N)


def build_rel_bias_masked(rel_bias, b):
    # (heads, N, N) -> (heads*B*N, B*N) slab: rel bias on same-batch diagonal
    # blocks, -1e9 on cross-batch blocks (softmax zeroes them out). bf16 halves DMA.
    heads, n, _ = rel_bias.shape
    full = jnp.full((heads, b, n, b, n), NEG_INF, jnp.float32)
    for bi in range(b):
        full = full.at[:, bi, :, bi, :].set(rel_bias)
    return full.reshape(heads * b * n, b * n).astype(jnp.bfloat16)


# ---------------- wrapper ------------------------------------------------------
def self_attention_pallas(x_nchw, params, rel_bias):
    b, c, h, w = x_nchw.shape
    n = h * w
    x_cn = x_nchw.reshape(b, c, n)          # NCHW -> (B, C, N): free reshape, no transpose
    kp = prepare_kernel_params(params, n, b)
    rel_masked = build_rel_bias_masked(rel_bias, b)

    def full_spec(arr):
        zeros = (0,) * arr.ndim
        return pl.BlockSpec(arr.shape, lambda i, _z=None: zeros)

    operands = (x_cn, kp["gamma"], kp["beta"], kp["wqkv"], kp["bqkv"],
                kp["wp"], kp["bp"], kp["gm2"], kp["sel"], kp["selT"], rel_masked)

    out = pl.pallas_call(
        self_attention_kernel,
        out_shape=jax.ShapeDtypeStruct((b, c, n), jnp.float32),
        grid=(1,),                                   # whole batch folded into lanes
        in_specs=[full_spec(a) for a in operands],
        out_specs=pl.BlockSpec((b, c, n), lambda i: (0, 0, 0)),
        compiler_params=pltpu.CompilerParams(dimension_semantics=("arbitrary",)),
    )(*operands)

    return out.reshape(b, c, h, w)          # (B, C, N) -> NCHW: free reshape


# ---------------- pure-JAX reference (for validation, full f32) ---------------
def reference(x_nchw, params, rel_bias):
    b, c, h, w = x_nchw.shape
    n = h * w
    x0 = x_nchw.reshape(b, c, n).transpose(0, 2, 1)           # (B, N, C)
    xg = x0.reshape(b, n, NUM_GROUPS, CG).transpose(0, 2, 1, 3)
    mu = jnp.mean(xg, axis=(2, 3), keepdims=True)
    var = jnp.mean((xg - mu) ** 2, axis=(2, 3), keepdims=True)
    xn = ((xg - mu) / jnp.sqrt(var + EPS)).transpose(0, 2, 1, 3).reshape(b, n, c)
    xn = xn * params["gamma"] + params["beta"]

    q = xn @ params["wq"].T + params["bq"]
    k = xn @ params["wk"].T + params["bk"]
    v = xn @ params["wv"].T + params["bv"]
    q = q.reshape(b, n, NUM_HEADS, HEAD_CH).transpose(0, 2, 1, 3)
    k = k.reshape(b, n, NUM_HEADS, HEAD_CH).transpose(0, 2, 1, 3)
    v = v.reshape(b, n, NUM_HEADS, HEAD_CH).transpose(0, 2, 1, 3)
    att = jnp.einsum('bhnd,bhmd->bhnm', q, k) * SCALE + rel_bias[None]
    att = jax.nn.softmax(att, axis=-1)
    out = jnp.einsum('bhnm,bhmd->bhnd', att, v)
    out = out.transpose(0, 2, 1, 3).reshape(b, n, c)
    proj = out @ params["wp"].T + params["bp"]
    y = proj + x0
    return y.transpose(0, 2, 1).reshape(b, c, h, w)


# ---------------- main ---------------------------------------------------------
if __name__ == "__main__":
    key = jax.random.PRNGKey(0)
    keys = jax.random.split(key, 8)

    def conv_init(k, c_out, c_in):
        # Kaiming-uniform-ish deterministic init (shapes match Conv2d 1x1: (C_out, C_in))
        bound = 1.0 / math.sqrt(c_in)
        wkey, bkey = jax.random.split(k)
        wgt = jax.random.uniform(wkey, (c_out, c_in), jnp.float32, -bound, bound)
        bia = jax.random.uniform(bkey, (c_out,), jnp.float32, -bound, bound)
        return wgt, bia

    wq, bq = conv_init(keys[0], EMB, EMB)
    wk, bk = conv_init(keys[1], EMB, EMB)
    wv, bv = conv_init(keys[2], EMB, EMB)
    wp, bp = conv_init(keys[3], EMB, EMB)

    params = {
        "gamma": jax.random.normal(keys[4], (EMB,), jnp.float32) * 0.1 + 1.0,
        "beta": jax.random.normal(keys[5], (EMB,), jnp.float32) * 0.1,
        "wq": wq, "bq": bq, "wk": wk, "bk": bk,
        "wv": wv, "bv": bv, "wp": wp, "bp": bp,
    }

    # RelativePositionEncoding parameter: (num_heads, (2H-1)*(2W-1)), std=0.02
    pos_enc = jax.random.normal(keys[6], (NUM_HEADS, (2 * H - 1) * (2 * W - 1)),
                                jnp.float32) * 0.02
    rel_bias = (relative_bias(pos_enc, H, W) if RELATIVE_ENCODING
                else jnp.zeros((NUM_HEADS, N, N), jnp.float32))

    x = jax.random.normal(keys[7], (B, EMB, H, W), jnp.float32)   # NCHW input

    y = jax.block_until_ready(self_attention_pallas(x, params, rel_bias))
    y_ref = reference(x, params, rel_bias)

    assert y.shape == (B, EMB, H, W)
    err = jnp.max(jnp.abs(y - y_ref))
    # tolerance leaves headroom for bf16 MXU operands (QKV, Q.K^T, P@V, proj)
    # and the approximate (EUP) softmax reciprocal vs. the full-f32 reference
    assert jnp.allclose(y, y_ref, atol=2e-2, rtol=2e-2), f"max abs err {err}"

    print("KERNEL_OK")
</pallas_src>

<mosaic_0001>
module attributes {stable_mosaic.version = 11 : i64} {
  func.func @self_attention_kernel(%arg0: i32, %arg1: memref<2x32x64xf32, #tpu.memory_space<vmem>>, %arg2: memref<32x1xf32, #tpu.memory_space<vmem>>, %arg3: memref<32x1xf32, #tpu.memory_space<vmem>>, %arg4: memref<96x32xbf16, #tpu.memory_space<vmem>>, %arg5: memref<96x1xf32, #tpu.memory_space<vmem>>, %arg6: memref<32x32xbf16, #tpu.memory_space<vmem>>, %arg7: memref<32x1xf32, #tpu.memory_space<vmem>>, %arg8: memref<64x64xf32, #tpu.memory_space<vmem>>, %arg9: memref<128x2xf32, #tpu.memory_space<vmem>>, %arg10: memref<2x128xf32, #tpu.memory_space<vmem>>, %arg11: memref<512x128xbf16, #tpu.memory_space<vmem>>, %arg12: memref<2x32x64xf32, #tpu.memory_space<vmem>>) attributes {dimension_semantics = [#tpu.dimension_semantics<arbitrary>], iteration_bounds = array<i64: 1>, scalar_prefetch = 0 : i64, scratch_operands = 0 : i64, tpu.core_type = #tpu.core_type<tc>, window_params = [{pipeline_mode = #tpu.pipeline_mode<synchronous>, transform_indices = @transform_0, window_bounds = array<i64: 2, 32, 64>}, {pipeline_mode = #tpu.pipeline_mode<synchronous>, transform_indices = @transform_1, window_bounds = array<i64: 32, 1>}, {pipeline_mode = #tpu.pipeline_mode<synchronous>, transform_indices = @transform_2, window_bounds = array<i64: 32, 1>}, {pipeline_mode = #tpu.pipeline_mode<synchronous>, transform_indices = @transform_3, window_bounds = array<i64: 96, 32>}, {pipeline_mode = #tpu.pipeline_mode<synchronous>, transform_indices = @transform_4, window_bounds = array<i64: 96, 1>}, {pipeline_mode = #tpu.pipeline_mode<synchronous>, transform_indices = @transform_5, window_bounds = array<i64: 32, 32>}, {pipeline_mode = #tpu.pipeline_mode<synchronous>, transform_indices = @transform_6, window_bounds = array<i64: 32, 1>}, {pipeline_mode = #tpu.pipeline_mode<synchronous>, transform_indices = @transform_7, window_bounds = array<i64: 64, 64>}, {pipeline_mode = #tpu.pipeline_mode<synchronous>, transform_indices = @transform_8, window_bounds = array<i64: 128, 2>}, {pipeline_mode = #tpu.pipeline_mode<synchronous>, transform_indices = @transform_9, window_bounds = array<i64: 2, 128>}, {pipeline_mode = #tpu.pipeline_mode<synchronous>, transform_indices = @transform_10, window_bounds = array<i64: 512, 128>}, {pipeline_mode = #tpu.pipeline_mode<synchronous>, transform_indices = @transform_11, window_bounds = array<i64: 2, 32, 64>}]} {
    %c0 = arith.constant 0 : index
    %c0_0 = arith.constant 0 : index
    %c0_1 = arith.constant 0 : index
    %0 = vector.load %arg1[%c0, %c0_0, %c0_1] : memref<2x32x64xf32, #tpu.memory_space<vmem>>, vector<1x32x64xf32>
    %1 = vector.shape_cast %0 : vector<1x32x64xf32> to vector<32x64xf32>
    %c1 = arith.constant 1 : index
    %c0_2 = arith.constant 0 : index
    %c0_3 = arith.constant 0 : index
    %2 = vector.load %arg1[%c1, %c0_2, %c0_3] : memref<2x32x64xf32, #tpu.memory_space<vmem>>, vector<1x32x64xf32>
    %3 = vector.shape_cast %2 : vector<1x32x64xf32> to vector<32x64xf32>
    %4 = tpu.concatenate %1, %3 in 1 : vector<32x64xf32>, vector<32x64xf32> -> vector<32x128xf32>
    %c0_4 = arith.constant 0 : index
    %c0_5 = arith.constant 0 : index
    %5 = vector.load %arg2[%c0_4, %c0_5] : memref<32x1xf32, #tpu.memory_space<vmem>>, vector<32x1xf32>
    %c0_6 = arith.constant 0 : index
    %c0_7 = arith.constant 0 : index
    %6 = vector.load %arg3[%c0_6, %c0_7] : memref<32x1xf32, #tpu.memory_space<vmem>>, vector<32x1xf32>
    %7 = arith.mulf %4, %4 : vector<32x128xf32>
    %8 = tpu.concatenate %4, %7 in 0 : vector<32x128xf32>, vector<32x128xf32> -> vector<64x128xf32>
    %c0_8 = arith.constant 0 : index
    %c0_9 = arith.constant 0 : index
    %9 = vector.load %arg9[%c0_8, %c0_9] : memref<128x2xf32, #tpu.memory_space<vmem>>, vector<128x2xf32>
    %cst = arith.constant dense<0.000000e+00> : vector<64x2xf32>
    %10 = tpu.matmul %8, %9, %cst {dimension_numbers = #tpu.dot_dimension_numbers<[1], [0], [0], [1], [0, 0, 1, 1], [], []>} : vector<64x128xf32>, vector<128x2xf32>, vector<64x2xf32> -> vector<64x2xf32>
    %c0_10 = arith.constant 0 : index
    %c0_11 = arith.constant 0 : index
    %11 = vector.load %arg8[%c0_10, %c0_11] : memref<64x64xf32, #tpu.memory_space<vmem>>, vector<64x64xf32>
    %cst_12 = arith.constant dense<0.000000e+00> : vector<64x2xf32>
    %12 = tpu.matmul %11, %10, %cst_12 {dimension_numbers = #tpu.dot_dimension_numbers<[1], [0], [0], [1], [0, 0, 1, 1], [], []>} : vector<64x64xf32>, vector<64x2xf32>, vector<64x2xf32> -> vector<64x2xf32>
    %13 = vector.extract_strided_slice %12 {offsets = [0, 0], sizes = [32, 2], strides = [1, 1]} : vector<64x2xf32> to vector<32x2xf32>
    %14 = vector.extract_strided_slice %12 {offsets = [32, 0], sizes = [32, 2], strides = [1, 1]} : vector<64x2xf32> to vector<32x2xf32>
    %15 = arith.mulf %13, %13 : vector<32x2xf32>
    %16 = arith.subf %14, %15 : vector<32x2xf32>
    %cst_13 = arith.constant 9.99999974E-6 : f32
    %17 = vector.broadcast %cst_13 : f32 to vector<32x2xf32>
    %18 = arith.addf %16, %17 : vector<32x2xf32>
    %19 = math.rsqrt %18 : vector<32x2xf32>
    %20 = vector.broadcast %5 : vector<32x1xf32> to vector<32x2xf32>
    %21 = arith.mulf %19, %20 : vector<32x2xf32>
    %22 = arith.mulf %13, %21 : vector<32x2xf32>
    %23 = vector.broadcast %6 : vector<32x1xf32> to vector<32x2xf32>
    %24 = arith.subf %23, %22 : vector<32x2xf32>
    %25 = tpu.concatenate %21, %24 in 0 : vector<32x2xf32>, vector<32x2xf32> -> vector<64x2xf32>
    %c0_14 = arith.constant 0 : index
    %c0_15 = arith.constant 0 : index
    %26 = vector.load %arg10[%c0_14, %c0_15] : memref<2x128xf32, #tpu.memory_space<vmem>>, vector<2x128xf32>
    %cst_16 = arith.constant dense<0.000000e+00> : vector<64x128xf32>
    %27 = tpu.matmul %25, %26, %cst_16 {dimension_numbers = #tpu.dot_dimension_numbers<[1], [0], [0], [1], [0, 0, 1, 1], [], []>} : vector<64x2xf32>, vector<2x128xf32>, vector<64x128xf32> -> vector<64x128xf32>
    %28 = vector.extract_strided_slice %27 {offsets = [0, 0], sizes = [32, 128], strides = [1, 1]} : vector<64x128xf32> to vector<32x128xf32>
    %29 = arith.mulf %4, %28 : vector<32x128xf32>
    %30 = vector.extract_strided_slice %27 {offsets = [32, 0], sizes = [32, 128], strides = [1, 1]} : vector<64x128xf32> to vector<32x128xf32>
    %31 = arith.addf %29, %30 : vector<32x128xf32>
    %c0_17 = arith.constant 0 : index
    %c0_18 = arith.constant 0 : index
    %32 = vector.load %arg4[%c0_17, %c0_18] : memref<96x32xbf16, #tpu.memory_space<vmem>>, vector<96x32xbf16>
    %33 = arith.truncf %31 : vector<32x128xf32> to vector<32x128xbf16>
    %cst_19 = arith.constant dense<0.000000e+00> : vector<96x128xf32>
    %34 = tpu.matmul %32, %33, %cst_19 {dimension_numbers = #tpu.dot_dimension_numbers<[1], [0], [0], [1], [0, 0, 1, 1], [], []>} : vector<96x32xbf16>, vector<32x128xbf16>, vector<96x128xf32> -> vector<96x128xf32>
    %c0_20 = arith.constant 0 : index
    %c0_21 = arith.constant 0 : index
    %35 = vector.load %arg5[%c0_20, %c0_21] : memref<96x1xf32, #tpu.memory_space<vmem>>, vector<96x1xf32>
    %36 = vector.broadcast %35 : vector<96x1xf32> to vector<96x128xf32>
    %37 = arith.addf %34, %36 : vector<96x128xf32>
    %38 = arith.truncf %37 : vector<96x128xf32> to vector<96x128xbf16>
    %39 = vector.extract_strided_slice %38 {offsets = [0, 0], sizes = [8, 128], strides = [1, 1]} : vector<96x128xbf16> to vector<8x128xbf16>
    %40 = vector.extract_strided_slice %38 {offsets = [32, 0], sizes = [8, 128], strides = [1, 1]} : vector<96x128xbf16> to vector<8x128xbf16>
    %cst_22 = arith.constant dense<0.000000e+00> : vector<128x128xf32>
    %41 = tpu.matmul %39, %40, %cst_22 {dimension_numbers = #tpu.dot_dimension_numbers<[0], [0], [1], [1], [0, 1, 1, 1], [], []>} : vector<8x128xbf16>, vector<8x128xbf16>, vector<128x128xf32> -> vector<128x128xf32>
    %42 = vector.extract_strided_slice %38 {offsets = [8, 0], sizes = [8, 128], strides = [1, 1]} : vector<96x128xbf16> to vector<8x128xbf16>
    %43 = vector.extract_strided_slice %38 {offsets = [40, 0], sizes = [8, 128], strides = [1, 1]} : vector<96x128xbf16> to vector<8x128xbf16>
    %cst_23 = arith.constant dense<0.000000e+00> : vector<128x128xf32>
    %44 = tpu.matmul %42, %43, %cst_23 {dimension_numbers = #tpu.dot_dimension_numbers<[0], [0], [1], [1], [0, 1, 1, 1], [], []>} : vector<8x128xbf16>, vector<8x128xbf16>, vector<128x128xf32> -> vector<128x128xf32>
    %45 = vector.extract_strided_slice %38 {offsets = [16, 0], sizes = [8, 128], strides = [1, 1]} : vector<96x128xbf16> to vector<8x128xbf16>
    %46 = vector.extract_strided_slice %38 {offsets = [48, 0], sizes = [8, 128], strides = [1, 1]} : vector<96x128xbf16> to vector<8x128xbf16>
    %cst_24 = arith.constant dense<0.000000e+00> : vector<128x128xf32>
    %47 = tpu.matmul %45, %46, %cst_24 {dimension_numbers = #tpu.dot_dimension_numbers<[0], [0], [1], [1], [0, 1, 1, 1], [], []>} : vector<8x128xbf16>, vector<8x128xbf16>, vector<128x128xf32> -> vector<128x128xf32>
    %48 = vector.extract_strided_slice %38 {offsets = [24, 0], sizes = [8, 128], strides = [1, 1]} : vector<96x128xbf16> to vector<8x128xbf16>
    %49 = vector.extract_strided_slice %38 {offsets = [56, 0], sizes = [8, 128], strides = [1, 1]} : vector<96x128xbf16> to vector<8x128xbf16>
    %cst_25 = arith.constant dense<0.000000e+00> : vector<128x128xf32>
    %50 = tpu.matmul %48, %49, %cst_25 {dimension_numbers = #tpu.dot_dimension_numbers<[0], [0], [1], [1], [0, 1, 1, 1], [], []>} : vector<8x128xbf16>, vector<8x128xbf16>, vector<128x128xf32> -> vector<128x128xf32>
    %51 = tpu.concatenate %41, %44, %47, %50 in 0 : vector<128x128xf32>, vector<128x128xf32>, vector<128x128xf32>, vector<128x128xf32> -> vector<512x128xf32>
    %c0_26 = arith.constant 0 : index
    %c0_27 = arith.constant 0 : index
    %52 = vector.load %arg11[%c0_26, %c0_27] : memref<512x128xbf16, #tpu.memory_space<vmem>>, vector<512x128xbf16>
    %53 = arith.extf %52 : vector<512x128xbf16> to vector<512x128xf32>
    %54 = arith.addf %51, %53 : vector<512x128xf32>
    %cst_28 = arith.constant dense<0xFF800000> : vector<512xf32>
    %55 = vector.multi_reduction <maximumf>, %54, %cst_28 [1] : vector<512x128xf32> to vector<512xf32>
    %56 = vector.shape_cast %55 : vector<512xf32> to vector<512x1xf32>
    %57 = vector.broadcast %56 : vector<512x1xf32> to vector<512x128xf32>
    %58 = arith.subf %54, %57 : vector<512x128xf32>
    %59 = math.exp %58 : vector<512x128xf32>
    %cst_29 = arith.constant dense<0.000000e+00> : vector<512xf32>
    %60 = vector.multi_reduction <add>, %59, %cst_29 [1] : vector<512x128xf32> to vector<512xf32>
    %61 = vector.shape_cast %60 : vector<512xf32> to vector<512x1xf32>
    %62 = tpu.reciprocal %61 {approx = true} : vector<512x1xf32> -> vector<512x1xf32>
    %63 = vector.broadcast %62 : vector<512x1xf32> to vector<512x128xf32>
    %64 = arith.mulf %59, %63 : vector<512x128xf32>
    %65 = arith.truncf %64 : vector<512x128xf32> to vector<512x128xbf16>
    %66 = vector.extract_strided_slice %38 {offsets = [64, 0], sizes = [8, 128], strides = [1, 1]} : vector<96x128xbf16> to vector<8x128xbf16>
    %67 = vector.extract_strided_slice %65 {offsets = [0, 0], sizes = [128, 128], strides = [1, 1]} : vector<512x128xbf16> to vector<128x128xbf16>
    %cst_30 = arith.constant dense<0.000000e+00> : vector<8x128xf32>
    %68 = tpu.matmul %66, %67, %cst_30 {dimension_numbers = #tpu.dot_dimension_numbers<[1], [1], [0], [0], [0, 0, 1, 0], [], []>} : vector<8x128xbf16>, vector<128x128xbf16>, vector<8x128xf32> -> vector<8x128xf32>
    %69 = vector.extract_strided_slice %38 {offsets = [72, 0], sizes = [8, 128], strides = [1, 1]} : vector<96x128xbf16> to vector<8x128xbf16>
    %70 = vector.extract_strided_slice %65 {offsets = [128, 0], sizes = [128, 128], strides = [1, 1]} : vector<512x128xbf16> to vector<128x128xbf16>
    %cst_31 = arith.constant dense<0.000000e+00> : vector<8x128xf32>
    %71 = tpu.matmul %69, %70, %cst_31 {dimension_numbers = #tpu.dot_dimension_numbers<[1], [1], [0], [0], [0, 0, 1, 0], [], []>} : vector<8x128xbf16>, vector<128x128xbf16>, vector<8x128xf32> -> vector<8x128xf32>
    %72 = vector.extract_strided_slice %38 {offsets = [80, 0], sizes = [8, 128], strides = [1, 1]} : vector<96x128xbf16> to vector<8x128xbf16>
    %73 = vector.extract_strided_slice %65 {offsets = [256, 0], sizes = [128, 128], strides = [1, 1]} : vector<512x128xbf16> to vector<128x128xbf16>
    %cst_32 = arith.constant dense<0.000000e+00> : vector<8x128xf32>
    %74 = tpu.matmul %72, %73, %cst_32 {dimension_numbers = #tpu.dot_dimension_numbers<[1], [1], [0], [0], [0, 0, 1, 0], [], []>} : vector<8x128xbf16>, vector<128x128xbf16>, vector<8x128xf32> -> vector<8x128xf32>
    %75 = vector.extract_strided_slice %38 {offsets = [88, 0], sizes = [8, 128], strides = [1, 1]} : vector<96x128xbf16> to vector<8x128xbf16>
    %76 = vector.extract_strided_slice %65 {offsets = [384, 0], sizes = [128, 128], strides = [1, 1]} : vector<512x128xbf16> to vector<128x128xbf16>
    %cst_33 = arith.constant dense<0.000000e+00> : vector<8x128xf32>
    %77 = tpu.matmul %75, %76, %cst_33 {dimension_numbers = #tpu.dot_dimension_numbers<[1], [1], [0], [0], [0, 0, 1, 0], [], []>} : vector<8x128xbf16>, vector<128x128xbf16>, vector<8x128xf32> -> vector<8x128xf32>
    %78 = tpu.concatenate %68, %71, %74, %77 in 0 : vector<8x128xf32>, vector<8x128xf32>, vector<8x128xf32>, vector<8x128xf32> -> vector<32x128xf32>
    %79 = arith.truncf %78 : vector<32x128xf32> to vector<32x128xbf16>
    %c0_34 = arith.constant 0 : index
    %c0_35 = arith.constant 0 : index
    %80 = vector.load %arg6[%c0_34, %c0_35] : memref<32x32xbf16, #tpu.memory_space<vmem>>, vector<32x32xbf16>
    %cst_36 = arith.constant dense<0.000000e+00> : vector<32x128xf32>
    %81 = tpu.matmul %80, %79, %cst_36 {dimension_numbers = #tpu.dot_dimension_numbers<[1], [0], [0], [1], [0, 0, 1, 1], [], []>} : vector<32x32xbf16>, vector<32x128xbf16>, vector<32x128xf32> -> vector<32x128xf32>
    %c0_37 = arith.constant 0 : index
    %c0_38 = arith.constant 0 : index
    %82 = vector.load %arg7[%c0_37, %c0_38] : memref<32x1xf32, #tpu.memory_space<vmem>>, vector<32x1xf32>
    %83 = vector.broadcast %82 : vector<32x1xf32> to vector<32x128xf32>
    %84 = arith.addf %81, %83 : vector<32x128xf32>
    %85 = arith.addf %84, %4 : vector<32x128xf32>
    %86 = vector.extract_strided_slice %85 {offsets = [0, 0], sizes = [32, 64], strides = [1, 1]} : vector<32x128xf32> to vector<32x64xf32>
    %c0_39 = arith.constant 0 : index
    %c0_40 = arith.constant 0 : index
    %c0_41 = arith.constant 0 : index
    %87 = vector.load %arg12[%c0_39, %c0_40, %c0_41] : memref<2x32x64xf32, #tpu.memory_space<vmem>>, vector<1x32x64xf32>
    %88 = vector.shape_cast %87 : vector<1x32x64xf32> to vector<32x64xf32>
    %89 = vector.shape_cast %86 : vector<32x64xf32> to vector<1x32x64xf32>
    tpu.vector_store %arg12[%c0_39, %c0_40, %c0_41], %89 {strides = array<i32>} : memref<2x32x64xf32, #tpu.memory_space<vmem>>, vector<1x32x64xf32>,
    %90 = vector.extract_strided_slice %85 {offsets = [0, 64], sizes = [32, 64], strides = [1, 1]} : vector<32x128xf32> to vector<32x64xf32>
    %c1_42 = arith.constant 1 : index
    %c0_43 = arith.constant 0 : index
    %c0_44 = arith.constant 0 : index
    %91 = vector.load %arg12[%c1_42, %c0_43, %c0_44] : memref<2x32x64xf32, #tpu.memory_space<vmem>>, vector<1x32x64xf32>
    %92 = vector.shape_cast %91 : vector<1x32x64xf32> to vector<32x64xf32>
    %93 = vector.shape_cast %90 : vector<32x64xf32> to vector<1x32x64xf32>
    tpu.vector_store %arg12[%c1_42, %c0_43, %c0_44], %93 {strides = array<i32>} : memref<2x32x64xf32, #tpu.memory_space<vmem>>, vector<1x32x64xf32>,
    return
  }
  func.func @transform_0(%arg0: i32) -> (i32, i32, i32) {
    %c0_i32 = arith.constant 0 : i32
    %c0_i32_0 = arith.constant 0 : i32
    %c0_i32_1 = arith.constant 0 : i32
    %c0_i32_2 = arith.constant 0 : i32
    return %c0_i32, %c0_i32_0, %c0_i32_1 : i32, i32, i32
  }
  func.func @transform_1(%arg0: i32) -> (i32, i32) {
    %c0_i32 = arith.constant 0 : i32
    %c0_i32_0 = arith.constant 0 : i32
    %c0_i32_1 = arith.constant 0 : i32
    return %c0_i32, %c0_i32_0 : i32, i32
  }
  func.func @transform_2(%arg0: i32) -> (i32, i32) {
    %c0_i32 = arith.constant 0 : i32
    %c0_i32_0 = arith.constant 0 : i32
    %c0_i32_1 = arith.constant 0 : i32
    return %c0_i32, %c0_i32_0 : i32, i32
  }
  func.func @transform_3(%arg0: i32) -> (i32, i32) {
    %c0_i32 = arith.constant 0 : i32
    %c0_i32_0 = arith.constant 0 : i32
    %c0_i32_1 = arith.constant 0 : i32
    return %c0_i32, %c0_i32_0 : i32, i32
  }
  func.func @transform_4(%arg0: i32) -> (i32, i32) {
    %c0_i32 = arith.constant 0 : i32
    %c0_i32_0 = arith.constant 0 : i32
    %c0_i32_1 = arith.constant 0 : i32
    return %c0_i32, %c0_i32_0 : i32, i32
  }
  func.func @transform_5(%arg0: i32) -> (i32, i32) {
    %c0_i32 = arith.constant 0 : i32
    %c0_i32_0 = arith.constant 0 : i32
    %c0_i32_1 = arith.constant 0 : i32
    return %c0_i32, %c0_i32_0 : i32, i32
  }
  func.func @transform_6(%arg0: i32) -> (i32, i32) {
    %c0_i32 = arith.constant 0 : i32
    %c0_i32_0 = arith.constant 0 : i32
    %c0_i32_1 = arith.constant 0 : i32
    return %c0_i32, %c0_i32_0 : i32, i32
  }
  func.func @transform_7(%arg0: i32) -> (i32, i32) {
    %c0_i32 = arith.constant 0 : i32
    %c0_i32_0 = arith.constant 0 : i32
    %c0_i32_1 = arith.constant 0 : i32
    return %c0_i32, %c0_i32_0 : i32, i32
  }
  func.func @transform_8(%arg0: i32) -> (i32, i32) {
    %c0_i32 = arith.constant 0 : i32
    %c0_i32_0 = arith.constant 0 : i32
    %c0_i32_1 = arith.constant 0 : i32
    return %c0_i32, %c0_i32_0 : i32, i32
  }
  func.func @transform_9(%arg0: i32) -> (i32, i32) {
    %c0_i32 = arith.constant 0 : i32
    %c0_i32_0 = arith.constant 0 : i32
    %c0_i32_1 = arith.constant 0 : i32
    return %c0_i32, %c0_i32_0 : i32, i32
  }
  func.func @transform_10(%arg0: i32) -> (i32, i32) {
    %c0_i32 = arith.constant 0 : i32
    %c0_i32_0 = arith.constant 0 : i32
    %c0_i32_1 = arith.constant 0 : i32
    return %c0_i32, %c0_i32_0 : i32, i32
  }
  func.func @transform_11(%arg0: i32) -> (i32, i32, i32) {
    %c0_i32 = arith.constant 0 : i32
    %c0_i32_0 = arith.constant 0 : i32
    %c0_i32_1 = arith.constant 0 : i32
    %c0_i32_2 = arith.constant 0 : i32
    return %c0_i32, %c0_i32_0, %c0_i32_1 : i32, i32, i32
  }
}

</mosaic_0001>

<llo_original>
// kernel: tpu_custom_call.1
$region0: #{tpu_custom_call.1}
  #allocation0 [shape = 'u32[]', space=smem, size = 0x4, offset = 0x4, fixed_abs, tag = 'smem constant byte address 0x4 - core index']
  #allocation1 [shape = 'u32[144,128]{1,0:T(1,128)}', space=vmem, size = 0x12000, scoped, tag = 'internal scratch']
  %s0 = inlined_call_operand.vmem [shape: f32[2,32,64], index: 0, kind: input, shape index: {}]
  %s1 = inlined_call_operand.vmem [shape: f32[32,1], index: 1, kind: input, shape index: {}]
  %s2 = inlined_call_operand.vmem [shape: f32[32,1], index: 2, kind: input, shape index: {}]
  %s3 = inlined_call_operand.vmem [shape: bf16[96,32], index: 3, kind: input, shape index: {}]
  %s4 = inlined_call_operand.vmem [shape: f32[96,1], index: 4, kind: input, shape index: {}]
  %s5 = inlined_call_operand.vmem [shape: bf16[32,32], index: 5, kind: input, shape index: {}]
  %s6 = inlined_call_operand.vmem [shape: f32[32,1], index: 6, kind: input, shape index: {}]
  %s7 = inlined_call_operand.vmem [shape: f32[64,64], index: 7, kind: input, shape index: {}]
  %s8 = inlined_call_operand.vmem [shape: f32[128,2], index: 8, kind: input, shape index: {}]
  %s9 = inlined_call_operand.vmem [shape: f32[2,128], index: 9, kind: input, shape index: {}]
  %s10 = inlined_call_operand.vmem [shape: bf16[512,128], index: 10, kind: input, shape index: {}]
  %s11 = inlined_call_operand.hbm [shape: f32[2,32,64], index: 11, kind: output, shape index: {}]
  %s12 = sld [smem:[#allocation0]]
  $region54: #{tpu_custom_call.1} parent=0
    _
  %s14 = ssub.s32 1, %s12
  %s15 = scalar_select 0, %s14, %s12
  $region1: #{tpu_custom_call.1} parent=0
    #allocation2 [shape = 'u8[32768]{0}', space=vmem, size = 0x8000, scoped, tag = 'output window, operand 0, single buffered']
    #allocation3 [shape = 's32[1]{0}', space=sflag, size = 0x4, scoped, tag = 'scoped memory for tpu_custom_call.1']
    %16 = vsyncpa [#allocation3], 0
    // Predicated region
    $region2: #{tpu_custom_call.1} parent=1 // pred_check
      _
    $region3: #{tpu_custom_call.1} parent=1 // pred_check_branch
      %18 = sbr.rel (0) target = $region5
    $region4: #{tpu_custom_call.1} parent=1 // pred_region
      _
    $region5: #{tpu_custom_call.1} parent=1 // pred_fallthru
      _
    // Predicated region
    $region6: #{tpu_custom_call.1} parent=1 // pred_check
      _
    $region7: #{tpu_custom_call.1} parent=1 // pred_check_branch
      %20 = sbr.rel (0) target = $region9
    $region8: #{tpu_custom_call.1} parent=1 // pred_region
      _
    $region9: #{tpu_custom_call.1} parent=1 // pred_fallthru
      _
    // Predicated region
    $region10: #{tpu_custom_call.1} parent=1 // pred_check
      _
    $region11: #{tpu_custom_call.1} parent=1 // pred_check_branch
      %22 = sbr.rel (0) target = $region13
    $region12: #{tpu_custom_call.1} parent=1 // pred_region
      _
    $region13: #{tpu_custom_call.1} parent=1 // pred_fallthru
      _
    // Predicated region
    $region14: #{tpu_custom_call.1} parent=1 // pred_check
      _
    $region15: #{tpu_custom_call.1} parent=1 // pred_check_branch
      %24 = sbr.rel (0) target = $region17
    $region16: #{tpu_custom_call.1} parent=1 // pred_region
      _
    $region17: #{tpu_custom_call.1} parent=1 // pred_fallthru
      _
    // Predicated region
    $region18: #{tpu_custom_call.1} parent=1 // pred_check
      _
    $region19: #{tpu_custom_call.1} parent=1 // pred_check_branch
      %26 = sbr.rel (0) target = $region21
    $region20: #{tpu_custom_call.1} parent=1 // pred_region
      _
    $region21: #{tpu_custom_call.1} parent=1 // pred_fallthru
      _
    // Predicated region
    $region22: #{tpu_custom_call.1} parent=1 // pred_check
      _
    $region23: #{tpu_custom_call.1} parent=1 // pred_check_branch
      %28 = sbr.rel (0) target = $region25
    $region24: #{tpu_custom_call.1} parent=1 // pred_region
      _
    $region25: #{tpu_custom_call.1} parent=1 // pred_fallthru
      _
    // Predicated region
    $region26: #{tpu_custom_call.1} parent=1 // pred_check
      _
    $region27: #{tpu_custom_call.1} parent=1 // pred_check_branch
      %30 = sbr.rel (0) target = $region29
    $region28: #{tpu_custom_call.1} parent=1 // pred_region
      _
    $region29: #{tpu_custom_call.1} parent=1 // pred_fallthru
      _
    // Predicated region
    $region30: #{tpu_custom_call.1} parent=1 // pred_check
      _
    $region31: #{tpu_custom_call.1} parent=1 // pred_check_branch
      %32 = sbr.rel (0) target = $region33
    $region32: #{tpu_custom_call.1} parent=1 // pred_region
      _
    $region33: #{tpu_custom_call.1} parent=1 // pred_fallthru
      _
    // Predicated region
    $region34: #{tpu_custom_call.1} parent=1 // pred_check
      _
    $region35: #{tpu_custom_call.1} parent=1 // pred_check_branch
      %34 = sbr.rel (0) target = $region37
    $region36: #{tpu_custom_call.1} parent=1 // pred_region
      _
    $region37: #{tpu_custom_call.1} parent=1 // pred_fallthru
      _
    // Predicated region
    $region38: #{tpu_custom_call.1} parent=1 // pred_check
      _
    $region39: #{tpu_custom_call.1} parent=1 // pred_check_branch
      %36 = sbr.rel (0) target = $region41
    $region40: #{tpu_custom_call.1} parent=1 // pred_region
      _
    $region41: #{tpu_custom_call.1} parent=1 // pred_fallthru
      _
    // Predicated region
    $region42: #{tpu_custom_call.1} parent=1 // pred_check
      _
    $region43: #{tpu_custom_call.1} parent=1 // pred_check_branch
      %38 = sbr.rel (0) target = $region45
    $region44: #{tpu_custom_call.1} parent=1 // pred_region
      _
    $region45: #{tpu_custom_call.1} parent=1 // pred_fallthru
      _
    %v40 = vld [vmem:[%s0] sm:$0xff]
    %v41 = vld [vmem:[%s0 + $0x8] sm:$0xff]
    %v42 = vld [vmem:[%s0 + $0x10] sm:$0xff]
    %v43 = vld [vmem:[%s0 + $0x18] sm:$0xff]
    %s44 = scalar_lea.vmem %s0, 32
    %v45 = vld [vmem:[%s44] sm:$0xff]
    %v46 = vld [vmem:[%s44 + $0x8] sm:$0xff]
    %v47 = vld [vmem:[%s44 + $0x10] sm:$0xff]
    %v48 = vld [vmem:[%s44 + $0x18] sm:$0xff]
    %53 = vrot.lane.b32.xlu0 %v45, 64
    %v54 = vpop.permute.xlu0 %53
    %55 = vrot.lane.b32.xlu0 %v46, 64
    %v56 = vpop.permute.xlu0 %55
    %57 = vrot.lane.b32.xlu0 %v47, 64
    %v58 = vpop.permute.xlu0 %57
    %59 = vrot.lane.b32.xlu0 %v48, 64
    %v60 = vpop.permute.xlu0 %59
    %vm65 = vcmask 523264
    %v66 = vsel %vm65, %v40, %v54
    %v67 = vsel %vm65, %v41, %v56
    %v68 = vsel %vm65, %v42, %v58
    %v69 = vsel %vm65, %v43, %v60
    %v70 = vld [vmem:[%s1] sm:$0xff]
    %v71 = vld [vmem:[%s1 + $0x8] sm:$0xff]
    %v72 = vld [vmem:[%s1 + $0x10] sm:$0xff]
    %v73 = vld [vmem:[%s1 + $0x18] sm:$0xff]
    %v74 = vld [vmem:[%s2] sm:$0xff]
    %v75 = vld [vmem:[%s2 + $0x8] sm:$0xff]
    %v76 = vld [vmem:[%s2 + $0x10] sm:$0xff]
    %v77 = vld [vmem:[%s2 + $0x18] sm:$0xff]
    %v78 = vmul.f32 %v66, %v66
    %v79 = vmul.f32 %v67, %v67
    %v80 = vmul.f32 %v68, %v68
    %v81 = vmul.f32 %v69, %v69
    %v82 = vld [vmem:[%s8] sm:$0xff]
    %v83 = vld [vmem:[%s8 + $0x8] sm:$0xff]
    %v84 = vld [vmem:[%s8 + $0x10] sm:$0xff]
    %v85 = vld [vmem:[%s8 + $0x18] sm:$0xff]
    %v86 = vld [vmem:[%s8 + $0x20] sm:$0xff]
    %v87 = vld [vmem:[%s8 + $0x28] sm:$0xff]
    %v88 = vld [vmem:[%s8 + $0x30] sm:$0xff]
    %v89 = vld [vmem:[%s8 + $0x38] sm:$0xff]
    %v90 = vld [vmem:[%s8 + $0x40] sm:$0xff]
    %v91 = vld [vmem:[%s8 + $0x48] sm:$0xff]
    %v92 = vld [vmem:[%s8 + $0x50] sm:$0xff]
    %v93 = vld [vmem:[%s8 + $0x58] sm:$0xff]
    %v94 = vld [vmem:[%s8 + $0x60] sm:$0xff]
    %v95 = vld [vmem:[%s8 + $0x68] sm:$0xff]
    %v96 = vld [vmem:[%s8 + $0x70] sm:$0xff]
    %v97 = vld [vmem:[%s8 + $0x78] sm:$0xff]
    %98 = vmatprep.subr.mxu0 0.0
    %99 = vmatpush1.msra.mxu0 %v82
    %100 = vmatprep.subr.mxu0 0.0
    %101 = vmatpush1.msra.mxu0 %v83
    %102 = vmatprep.subr.mxu0 0.0
    %103 = vmatpush1.msra.mxu0 %v84
    %104 = vmatprep.subr.mxu0 0.0
    %105 = vmatpush1.msra.mxu0 %v85
    %106 = vmatprep.subr.mxu0 0.0
    %107 = vmatpush1.msra.mxu0 %v86
    %108 = vmatprep.subr.mxu0 0.0
    %109 = vmatpush1.msra.mxu0 %v87
    %110 = vmatprep.subr.mxu0 0.0
    %111 = vmatpush1.msra.mxu0 %v88
    %112 = vmatprep.subr.mxu0 0.0
    %113 = vmatpush1.msra.mxu0 %v89
    %114 = vmatprep.subr.mxu0 0.0
    %115 = vmatpush1.msra.mxu0 %v90
    %116 = vmatprep.subr.mxu0 0.0
    %117 = vmatpush1.msra.mxu0 %v91
    %118 = vmatprep.subr.mxu0 0.0
    %119 = vmatpush1.msra.mxu0 %v92
    %120 = vmatprep.subr.mxu0 0.0
    %121 = vmatpush1.msra.mxu0 %v93
    %122 = vmatprep.subr.mxu0 0.0
    %123 = vmatpush1.msra.mxu0 %v94
    %124 = vmatprep.subr.mxu0 0.0
    %125 = vmatpush1.msra.mxu0 %v95
    %126 = vmatprep.subr.mxu0 0.0
    %127 = vmatpush1.msra.mxu0 %v96
    %128 = vmatprep.subr.mxu0 0.0
    %129 = vmatpush1.msra.mxu0 %v97
    %130 = vmatprep.subr.mxu0 0.0
    %131 = vmatpush1.msra.mxu0 0.0
    %132 = vmatprep.subr.mxu0 0.0
    %133 = vmatpush1.msra.mxu0 0.0
    %134 = vmatprep.subr.mxu0 0.0
    %135 = vmatpush1.msra.mxu0 0.0
    %136 = vmatprep.subr.mxu0 0.0
    %137 = vmatpush1.msra.mxu0 0.0
    %138 = vmatprep.subr.mxu0 0.0
    %139 = vmatpush1.msra.mxu0 0.0
    %140 = vmatprep.subr.mxu0 0.0
    %141 = vmatpush1.msra.mxu0 0.0
    %142 = vmatprep.subr.mxu0 0.0
    %143 = vmatpush1.msra.mxu0 0.0
    %144 = vmatprep.subr.mxu0 0.0
    %145 = vmatpush1.msra.mxu0 0.0
    %146 = vmatprep.subr.mxu0 0.0
    %147 = vmatpush1.msra.mxu0 0.0
    %148 = vmatprep.subr.mxu0 0.0
    %149 = vmatpush1.msra.mxu0 0.0
    %150 = vmatprep.subr.mxu0 0.0
    %151 = vmatpush1.msra.mxu0 0.0
    %152 = vmatprep.subr.mxu0 0.0
    %153 = vmatpush1.msra.mxu0 0.0
    %154 = vmatprep.subr.mxu0 0.0
    %155 = vmatpush1.msra.mxu0 0.0
    %156 = vmatprep.subr.mxu0 0.0
    %157 = vmatpush1.msra.mxu0 0.0
    %158 = vmatprep.subr.mxu0 0.0
    %159 = vmatpush1.msra.mxu0 0.0
    %160 = vmatprep.subr.mxu0 0.0
    %161 = vmatpush1.msra.mxu0 0.0
    %162 = vmatprep.mubr.f32.mxu0 0.0
    %163 = vmatmul.mubr.f32.gmra.mrb[0].mxu0 %v66
    %v164 = vpop.f32.mrb[0].mxu0
    %v165 = vadd.f32 0.0, %v164
    %v166 = vpop.f32.mrb[0].mxu0
    %167 = vmatprep.mubr.f32.mxu0 0.0
    %168 = vmatmul.mubr.f32.gmra.mrb[0].mxu0 %v67
    %v169 = vpop.f32.mrb[0].mxu0
    %v170 = vadd.f32 0.0, %v169
    %v171 = vpop.f32.mrb[0].mxu0
    %172 = vmatprep.mubr.f32.mxu0 0.0
    %173 = vmatmul.mubr.f32.gmra.mrb[0].mxu0 %v68
    %v174 = vpop.f32.mrb[0].mxu0
    %v175 = vadd.f32 0.0, %v174
    %v176 = vpop.f32.mrb[0].mxu0
    %177 = vmatprep.mubr.f32.mxu0 0.0
    %178 = vmatmul.mubr.f32.gmra.mrb[0].mxu0 %v69
    %v179 = vpop.f32.mrb[0].mxu0
    %v180 = vadd.f32 0.0, %v179
    %v181 = vpop.f32.mrb[0].mxu0
    %182 = vmatprep.mubr.f32.mxu0 0.0
    %183 = vmatmul.mubr.f32.gmra.mrb[0].mxu0 %v78
    %v184 = vpop.f32.mrb[0].mxu0
    %v185 = vadd.f32 0.0, %v184
    %v186 = vpop.f32.mrb[0].mxu0
    %187 = vmatprep.mubr.f32.mxu0 0.0
    %188 = vmatmul.mubr.f32.gmra.mrb[0].mxu0 %v79
    %v189 = vpop.f32.mrb[0].mxu0
    %v190 = vadd.f32 0.0, %v189
    %v191 = vpop.f32.mrb[0].mxu0
    %192 = vmatprep.mubr.f32.mxu0 0.0
    %193 = vmatmul.mubr.f32.gmra.mrb[0].mxu0 %v80
    %v194 = vpop.f32.mrb[0].mxu0
    %v195 = vadd.f32 0.0, %v194
    %v196 = vpop.f32.mrb[0].mxu0
    %197 = vmatprep.mubr.f32.mxu0 0.0
    %198 = vmatmul.mubr.f32.gmra.mrb[0].mxu0 %v81
    %v199 = vpop.f32.mrb[0].mxu0
    %v200 = vadd.f32 0.0, %v199
    %v201 = vpop.f32.mrb[0].mxu0
    %202 = vdwg.mxu0
    %v203 = vld [vmem:[%s7] sm:$0xff]
    %v204 = vld [vmem:[%s7 + $0x8] sm:$0xff]
    %v205 = vld [vmem:[%s7 + $0x10] sm:$0xff]
    %v206 = vld [vmem:[%s7 + $0x18] sm:$0xff]
    %v207 = vld [vmem:[%s7 + $0x20] sm:$0xff]
    %v208 = vld [vmem:[%s7 + $0x28] sm:$0xff]
    %v209 = vld [vmem:[%s7 + $0x30] sm:$0xff]
    %v210 = vld [vmem:[%s7 + $0x38] sm:$0xff]
    %v212 = vsel %vm65, %v203, 0
    %v215 = vsel %vm65, %v204, 0
    %v218 = vsel %vm65, %v205, 0
    %v221 = vsel %vm65, %v206, 0
    %v224 = vsel %vm65, %v207, 0
    %v227 = vsel %vm65, %v208, 0
    %v230 = vsel %vm65, %v209, 0
    %v233 = vsel %vm65, %v210, 0
    %235 = vmatprep.subr.mxu0 0.0
    %236 = vmatpush1.msra.mxu0 %v165
    %237 = vmatprep.subr.mxu0 0.0
    %238 = vmatpush1.msra.mxu0 %v170
    %239 = vmatprep.subr.mxu0 0.0
    %240 = vmatpush1.msra.mxu0 %v175
    %241 = vmatprep.subr.mxu0 0.0
    %242 = vmatpush1.msra.mxu0 %v180
    %243 = vmatprep.subr.mxu0 0.0
    %244 = vmatpush1.msra.mxu0 %v185
    %245 = vmatprep.subr.mxu0 0.0
    %246 = vmatpush1.msra.mxu0 %v190
    %247 = vmatprep.subr.mxu0 0.0
    %248 = vmatpush1.msra.mxu0 %v195
    %249 = vmatprep.subr.mxu0 0.0
    %250 = vmatpush1.msra.mxu0 %v200
    %251 = vmatprep.subr.mxu0 0.0
    %252 = vmatpush1.msra.mxu0 0.0
    %253 = vmatprep.subr.mxu0 0.0
    %254 = vmatpush1.msra.mxu0 0.0
    %255 = vmatprep.subr.mxu0 0.0
    %256 = vmatpush1.msra.mxu0 0.0
    %257 = vmatprep.subr.mxu0 0.0
    %258 = vmatpush1.msra.mxu0 0.0
    %259 = vmatprep.subr.mxu0 0.0
    %260 = vmatpush1.msra.mxu0 0.0
    %261 = vmatprep.subr.mxu0 0.0
    %262 = vmatpush1.msra.mxu0 0.0
    %263 = vmatprep.subr.mxu0 0.0
    %264 = vmatpush1.msra.mxu0 0.0
    %265 = vmatprep.subr.mxu0 0.0
    %266 = vmatpush1.msra.mxu0 0.0
    %267 = vmatprep.subr.mxu0 0.0
    %268 = vmatpush1.msra.mxu0 0.0
    %269 = vmatprep.subr.mxu0 0.0
    %270 = vmatpush1.msra.mxu0 0.0
    %271 = vmatprep.subr.mxu0 0.0
    %272 = vmatpush1.msra.mxu0 0.0
    %273 = vmatprep.subr.mxu0 0.0
    %274 = vmatpush1.msra.mxu0 0.0
    %275 = vmatprep.subr.mxu0 0.0
    %276 = vmatpush1.msra.mxu0 0.0
    %277 = vmatprep.subr.mxu0 0.0
    %278 = vmatpush1.msra.mxu0 0.0
    %279 = vmatprep.subr.mxu0 0.0
    %280 = vmatpush1.msra.mxu0 0.0
    %281 = vmatprep.subr.mxu0 0.0
    %282 = vmatpush1.msra.mxu0 0.0
    %283 = vmatprep.subr.mxu0 0.0
    %284 = vmatpush1.msra.mxu0 0.0
    %285 = vmatprep.subr.mxu0 0.0
    %286 = vmatpush1.msra.mxu0 0.0
    %287 = vmatprep.subr.mxu0 0.0
    %288 = vmatpush1.msra.mxu0 0.0
    %289 = vmatprep.subr.mxu0 0.0
    %290 = vmatpush1.msra.mxu0 0.0
    %291 = vmatprep.subr.mxu0 0.0
    %292 = vmatpush1.msra.mxu0 0.0
    %293 = vmatprep.subr.mxu0 0.0
    %294 = vmatpush1.msra.mxu0 0.0
    %295 = vmatprep.subr.mxu0 0.0
    %296 = vmatpush1.msra.mxu0 0.0
    %297 = vmatprep.subr.mxu0 0.0
    %298 = vmatpush1.msra.mxu0 0.0
    %299 = vmatprep.mubr.f32.mxu0 0.0
    %300 = vmatmul.mubr.f32.gmra.mrb[0].mxu0 %v212
    %v301 = vpop.f32.mrb[0].mxu0
    %v302 = vadd.f32 0.0, %v301
    %v303 = vpop.f32.mrb[0].mxu0
    %304 = vmatprep.mubr.f32.mxu0 0.0
    %305 = vmatmul.mubr.f32.gmra.mrb[0].mxu0 %v215
    %v306 = vpop.f32.mrb[0].mxu0
    %v307 = vadd.f32 0.0, %v306
    %v308 = vpop.f32.mrb[0].mxu0
    %309 = vmatprep.mubr.f32.mxu0 0.0
    %310 = vmatmul.mubr.f32.gmra.mrb[0].mxu0 %v218
    %v311 = vpop.f32.mrb[0].mxu0
    %v312 = vadd.f32 0.0, %v311
    %v313 = vpop.f32.mrb[0].mxu0
    %314 = vmatprep.mubr.f32.mxu0 0.0
    %315 = vmatmul.mubr.f32.gmra.mrb[0].mxu0 %v221
    %v316 = vpop.f32.mrb[0].mxu0
    %v317 = vadd.f32 0.0, %v316
    %v318 = vpop.f32.mrb[0].mxu0
    %319 = vmatprep.mubr.f32.mxu0 0.0
    %320 = vmatmul.mubr.f32.gmra.mrb[0].mxu0 %v224
    %v321 = vpop.f32.mrb[0].mxu0
    %v322 = vadd.f32 0.0, %v321
    %v323 = vpop.f32.mrb[0].mxu0
    %324 = vmatprep.mubr.f32.mxu0 0.0
    %325 = vmatmul.mubr.f32.gmra.mrb[0].mxu0 %v227
    %v326 = vpop.f32.mrb[0].mxu0
    %v327 = vadd.f32 0.0, %v326
    %v328 = vpop.f32.mrb[0].mxu0
    %329 = vmatprep.mubr.f32.mxu0 0.0
    %330 = vmatmul.mubr.f32.gmra.mrb[0].mxu0 %v230
    %v331 = vpop.f32.mrb[0].mxu0
    %v332 = vadd.f32 0.0, %v331
    %v333 = vpop.f32.mrb[0].mxu0
    %334 = vmatprep.mubr.f32.mxu0 0.0
    %335 = vmatmul.mubr.f32.gmra.mrb[0].mxu0 %v233
    %v336 = vpop.f32.mrb[0].mxu0
    %v337 = vadd.f32 0.0, %v336
    %v338 = vpop.f32.mrb[0].mxu0
    %339 = vdwg.mxu0
    %v340 = vmul.f32 %v302, %v302
    %v341 = vmul.f32 %v307, %v307
    %v342 = vmul.f32 %v312, %v312
    %v343 = vmul.f32 %v317, %v317
    %v344 = vsub.f32 %v322, %v340
    %v345 = vsub.f32 %v327, %v341
    %v346 = vsub.f32 %v332, %v342
    %v347 = vsub.f32 %v337, %v343
    %v348 = vadd.f32 %v344, 1e-05
    %v349 = vadd.f32 %v345, 1e-05
    %v350 = vadd.f32 %v346, 1e-05
    %v351 = vadd.f32 %v347, 1e-05
    %v352 = vrsqrt.pop %v348
    %v353 = vrsqrt.pop %v349
    %v354 = vrsqrt.pop %v350
    %v355 = vrsqrt.pop %v351
    %357 = vset.pattern.permute.xlu0 0
    %358 = vperm.xlu0 %357, %v70
    %v359 = vpop.permute.xlu0 %358
    %362 = vset.pattern.permute.xlu0 0
    %363 = vperm.xlu0 %362, %v71
    %v364 = vpop.permute.xlu0 %363
    %367 = vset.pattern.permute.xlu0 0
    %368 = vperm.xlu0 %367, %v72
    %v369 = vpop.permute.xlu0 %368
    %372 = vset.pattern.permute.xlu0 0
    %373 = vperm.xlu0 %372, %v73
    %v374 = vpop.permute.xlu0 %373
    %v376 = vmul.f32 %v352, %v359
    %v377 = vmul.f32 %v353, %v364
    %v378 = vmul.f32 %v354, %v369
    %v379 = vmul.f32 %v355, %v374
    %v380 = vmul.f32 %v302, %v376
    %v381 = vmul.f32 %v307, %v377
    %v382 = vmul.f32 %v312, %v378
    %v383 = vmul.f32 %v317, %v379
    %385 = vset.pattern.permute.xlu0 0
    %386 = vperm.xlu0 %385, %v74
    %v387 = vpop.permute.xlu0 %386
    %390 = vset.pattern.permute.xlu0 0
    %391 = vperm.xlu0 %390, %v75
    %v392 = vpop.permute.xlu0 %391
    %395 = vset.pattern.permute.xlu0 0
    %396 = vperm.xlu0 %395, %v76
    %v397 = vpop.permute.xlu0 %396
    %400 = vset.pattern.permute.xlu0 0
    %401 = vperm.xlu0 %400, %v77
    %v402 = vpop.permute.xlu0 %401
    %v404 = vsub.f32 %v387, %v380
    %v405 = vsub.f32 %v392, %v381
    %v406 = vsub.f32 %v397, %v382
    %v407 = vsub.f32 %v402, %v383
    %v408 = vld [vmem:[%s9] sm:$0x3]
    %vm409 = vcmask 15360
    %v411 = vsel %vm409, %v376, 0
    %v414 = vsel %vm409, %v377, 0
    %v417 = vsel %vm409, %v378, 0
    %v420 = vsel %vm409, %v379, 0
    %v423 = vsel %vm409, %v404, 0
    %v426 = vsel %vm409, %v405, 0
    %v429 = vsel %vm409, %v406, 0
    %v432 = vsel %vm409, %v407, 0
    %vm434 = vcmask 1041408
    %v436 = vsel %vm434, %v408, 0
    %438 = vmatprep.subr.mxu0 0.0
    %439 = vmatpush1.msra.mxu0 %v436
    %440 = vmatprep.subr.mxu0 0.0
    %441 = vmatpush1.msra.mxu0 0.0
    %442 = vmatprep.subr.mxu0 0.0
    %443 = vmatpush1.msra.mxu0 0.0
    %444 = vmatprep.subr.mxu0 0.0
    %445 = vmatpush1.msra.mxu0 0.0
    %446 = vmatprep.subr.mxu0 0.0
    %447 = vmatpush1.msra.mxu0 0.0
    %448 = vmatprep.subr.mxu0 0.0
    %449 = vmatpush1.msra.mxu0 0.0
    %450 = vmatprep.subr.mxu0 0.0
    %451 = vmatpush1.msra.mxu0 0.0
    %452 = vmatprep.subr.mxu0 0.0
    %453 = vmatpush1.msra.mxu0 0.0
    %454 = vmatprep.subr.mxu0 0.0
    %455 = vmatpush1.msra.mxu0 0.0
    %456 = vmatprep.subr.mxu0 0.0
    %457 = vmatpush1.msra.mxu0 0.0
    %458 = vmatprep.subr.mxu0 0.0
    %459 = vmatpush1.msra.mxu0 0.0
    %460 = vmatprep.subr.mxu0 0.0
    %461 = vmatpush1.msra.mxu0 0.0
    %462 = vmatprep.subr.mxu0 0.0
    %463 = vmatpush1.msra.mxu0 0.0
    %464 = vmatprep.subr.mxu0 0.0
    %465 = vmatpush1.msra.mxu0 0.0
    %466 = vmatprep.subr.mxu0 0.0
    %467 = vmatpush1.msra.mxu0 0.0
    %468 = vmatprep.subr.mxu0 0.0
    %469 = vmatpush1.msra.mxu0 0.0
    %470 = vmatprep.subr.mxu0 0.0
    %471 = vmatpush1.msra.mxu0 0.0
    %472 = vmatprep.subr.mxu0 0.0
    %473 = vmatpush1.msra.mxu0 0.0
    %474 = vmatprep.subr.mxu0 0.0
    %475 = vmatpush1.msra.mxu0 0.0
    %476 = vmatprep.subr.mxu0 0.0
    %477 = vmatpush1.msra.mxu0 0.0
    %478 = vmatprep.subr.mxu0 0.0
    %479 = vmatpush1.msra.mxu0 0.0
    %480 = vmatprep.subr.mxu0 0.0
    %481 = vmatpush1.msra.mxu0 0.0
    %482 = vmatprep.subr.mxu0 0.0
    %483 = vmatpush1.msra.mxu0 0.0
    %484 = vmatprep.subr.mxu0 0.0
    %485 = vmatpush1.msra.mxu0 0.0
    %486 = vmatprep.subr.mxu0 0.0
    %487 = vmatpush1.msra.mxu0 0.0
    %488 = vmatprep.subr.mxu0 0.0
    %489 = vmatpush1.msra.mxu0 0.0
    %490 = vmatprep.subr.mxu0 0.0
    %491 = vmatpush1.msra.mxu0 0.0
    %492 = vmatprep.subr.mxu0 0.0
    %493 = vmatpush1.msra.mxu0 0.0
    %494 = vmatprep.subr.mxu0 0.0
    %495 = vmatpush1.msra.mxu0 0.0
    %496 = vmatprep.subr.mxu0 0.0
    %497 = vmatpush1.msra.mxu0 0.0
    %498 = vmatprep.subr.mxu0 0.0
    %499 = vmatpush1.msra.mxu0 0.0
    %500 = vmatprep.subr.mxu0 0.0
    %501 = vmatpush1.msra.mxu0 0.0
    %502 = vmatprep.mubr.f32.mxu0 0.0
    %503 = vmatmul.mubr.f32.gmra.mrb[0].mxu0 %v411
    %v504 = vpop.f32.mrb[0].mxu0
    %v505 = vadd.f32 0.0, %v504
    %v506 = vpop.f32.mrb[0].mxu0
    %507 = vmatprep.mubr.f32.mxu0 0.0
    %508 = vmatmul.mubr.f32.gmra.mrb[0].mxu0 %v414
    %v509 = vpop.f32.mrb[0].mxu0
    %v510 = vadd.f32 0.0, %v509
    %v511 = vpop.f32.mrb[0].mxu0
    %512 = vmatprep.mubr.f32.mxu0 0.0
    %513 = vmatmul.mubr.f32.gmra.mrb[0].mxu0 %v417
    %v514 = vpop.f32.mrb[0].mxu0
    %v515 = vadd.f32 0.0, %v514
    %v516 = vpop.f32.mrb[0].mxu0
    %517 = vmatprep.mubr.f32.mxu0 0.0
    %518 = vmatmul.mubr.f32.gmra.mrb[0].mxu0 %v420
    %v519 = vpop.f32.mrb[0].mxu0
    %v520 = vadd.f32 0.0, %v519
    %v521 = vpop.f32.mrb[0].mxu0
    %522 = vmatprep.mubr.f32.mxu0 0.0
    %523 = vmatmul.mubr.f32.gmra.mrb[0].mxu0 %v423
    %v524 = vpop.f32.mrb[0].mxu0
    %v525 = vadd.f32 0.0, %v524
    %v526 = vpop.f32.mrb[0].mxu0
    %527 = vmatprep.mubr.f32.mxu0 0.0
    %528 = vmatmul.mubr.f32.gmra.mrb[0].mxu0 %v426
    %v529 = vpop.f32.mrb[0].mxu0
    %v530 = vadd.f32 0.0, %v529
    %v531 = vpop.f32.mrb[0].mxu0
    %532 = vmatprep.mubr.f32.mxu0 0.0
    %533 = vmatmul.mubr.f32.gmra.mrb[0].mxu0 %v429
    %v534 = vpop.f32.mrb[0].mxu0
    %v535 = vadd.f32 0.0, %v534
    %v536 = vpop.f32.mrb[0].mxu0
    %537 = vmatprep.mubr.f32.mxu0 0.0
    %538 = vmatmul.mubr.f32.gmra.mrb[0].mxu0 %v432
    %v539 = vpop.f32.mrb[0].mxu0
    %v540 = vadd.f32 0.0, %v539
    %v541 = vpop.f32.mrb[0].mxu0
    %542 = vdwg.mxu0
    %v543 = vmul.f32 %v66, %v505
    %v544 = vmul.f32 %v67, %v510
    %v545 = vmul.f32 %v68, %v515
    %v546 = vmul.f32 %v69, %v520
    %v547 = vadd.f32 %v543, %v525
    %v548 = vadd.f32 %v544, %v530
    %v549 = vadd.f32 %v545, %v535
    %v550 = vadd.f32 %v546, %v540
    %v551 = vld [vmem:[%s3] sm:$0xf]
    %v552 = vld [vmem:[%s3 + $0x4] sm:$0xf]
    %v553 = vld [vmem:[%s3 + $0x8] sm:$0xf]
    %v554 = vld [vmem:[%s3 + $0xc] sm:$0xf]
    %v555 = vld [vmem:[%s3 + $0x10] sm:$0xf]
    %v556 = vld [vmem:[%s3 + $0x14] sm:$0xf]
    %v557 = vld [vmem:[%s3 + $0x18] sm:$0xf]
    %v558 = vld [vmem:[%s3 + $0x1c] sm:$0xf]
    %v559 = vld [vmem:[%s3 + $0x20] sm:$0xf]
    %v560 = vld [vmem:[%s3 + $0x24] sm:$0xf]
    %v561 = vld [vmem:[%s3 + $0x28] sm:$0xf]
    %v562 = vld [vmem:[%s3 + $0x2c] sm:$0xf]
    %v563 = vpack.c.bf16 %v548, %v547
    %v564 = vpack.c.bf16 %v550, %v549
    %v565 = vld [vmem:[%s4] sm:$0xff]
    %v566 = vld [vmem:[%s4 + $0x8] sm:$0xff]
    %v567 = vld [vmem:[%s4 + $0x10] sm:$0xff]
    %v568 = vld [vmem:[%s4 + $0x18] sm:$0xff]
    %v569 = vld [vmem:[%s4 + $0x20] sm:$0xff]
    %v570 = vld [vmem:[%s4 + $0x28] sm:$0xff]
    %v571 = vld [vmem:[%s4 + $0x30] sm:$0xff]
    %v572 = vld [vmem:[%s4 + $0x38] sm:$0xff]
    %v573 = vld [vmem:[%s4 + $0x40] sm:$0xff]
    %v574 = vld [vmem:[%s4 + $0x48] sm:$0xff]
    %v575 = vld [vmem:[%s4 + $0x50] sm:$0xff]
    %v576 = vld [vmem:[%s4 + $0x58] sm:$0xff]
    %578 = vset.pattern.permute.xlu0 0
    %579 = vperm.xlu0 %578, %v565
    %v580 = vpop.permute.xlu0 %579
    %583 = vset.pattern.permute.xlu0 0
    %584 = vperm.xlu0 %583, %v566
    %v585 = vpop.permute.xlu0 %584
    %588 = vset.pattern.permute.xlu0 0
    %589 = vperm.xlu0 %588, %v567
    %v590 = vpop.permute.xlu0 %589
    %593 = vset.pattern.permute.xlu0 0
    %594 = vperm.xlu0 %593, %v568
    %v595 = vpop.permute.xlu0 %594
    %598 = vset.pattern.permute.xlu0 0
    %599 = vperm.xlu0 %598, %v569
    %v600 = vpop.permute.xlu0 %599
    %603 = vset.pattern.permute.xlu0 0
    %604 = vperm.xlu0 %603, %v570
    %v605 = vpop.permute.xlu0 %604
    %608 = vset.pattern.permute.xlu0 0
    %609 = vperm.xlu0 %608, %v571
    %v610 = vpop.permute.xlu0 %609
    %613 = vset.pattern.permute.xlu0 0
    %614 = vperm.xlu0 %613, %v572
    %v615 = vpop.permute.xlu0 %614
    %618 = vset.pattern.permute.xlu0 0
    %619 = vperm.xlu0 %618, %v573
    %v620 = vpop.permute.xlu0 %619
    %623 = vset.pattern.permute.xlu0 0
    %624 = vperm.xlu0 %623, %v574
    %v625 = vpop.permute.xlu0 %624
    %628 = vset.pattern.permute.xlu0 0
    %629 = vperm.xlu0 %628, %v575
    %v630 = vpop.permute.xlu0 %629
    %633 = vset.pattern.permute.xlu0 0
    %634 = vperm.xlu0 %633, %v576
    %v635 = vpop.permute.xlu0 %634
    %v649 = vunpack.c.l.b16 %v551
    %v650 = vunpack.c.l.b16 %v552
    %v651 = vunpack.c.l.b16 %v553
    %v652 = vunpack.c.l.b16 %v554
    %v653 = vunpack.c.l.b16 %v555
    %v654 = vunpack.c.l.b16 %v556
    %v655 = vunpack.c.l.b16 %v557
    %v656 = vunpack.c.l.b16 %v558
    %v657 = vunpack.c.l.b16 %v559
    %v658 = vunpack.c.l.b16 %v560
    %v659 = vunpack.c.l.b16 %v561
    %v660 = vunpack.c.l.b16 %v562
    %v661 = vpack.c.b16 %v650, %v649
    %v662 = vpack.c.b16 %v652, %v651
    %v663 = vpack.c.b16 %v654, %v653
    %v664 = vpack.c.b16 %v656, %v655
    %v665 = vpack.c.b16 %v658, %v657
    %v666 = vpack.c.b16 %v660, %v659
    %vm667 = vcmask 261120
    %v669 = vsel %vm667, %v661, 0
    %v672 = vsel %vm667, %v662, 0
    %v675 = vsel %vm667, %v663, 0
    %v678 = vsel %vm667, %v664, 0
    %v681 = vsel %vm667, %v665, 0
    %v684 = vsel %vm667, %v666, 0
    %686 = vmatprep.subr.bf16.mxu0 0
    %687 = vmatpush1.bf16.msra.mxu0 %v563
    %688 = vmatprep.subr.bf16.mxu0 0
    %689 = vmatpush1.bf16.msra.mxu0 %v564
    %690 = vmatprep.subr.bf16.mxu0 0
    %691 = vmatpush1.bf16.msra.mxu0 0
    %692 = vmatprep.subr.bf16.mxu0 0
    %693 = vmatpush1.bf16.msra.mxu0 0
    %694 = vmatprep.subr.bf16.mxu0 0
    %695 = vmatpush1.bf16.msra.mxu0 0
    %696 = vmatprep.subr.bf16.mxu0 0
    %697 = vmatpush1.bf16.msra.mxu0 0
    %698 = vmatprep.subr.bf16.mxu0 0
    %699 = vmatpush1.bf16.msra.mxu0 0
    %700 = vmatprep.subr.bf16.mxu0 0
    %701 = vmatpush1.bf16.msra.mxu0 0
    %702 = vmatprep.subr.bf16.mxu0 0
    %703 = vmatpush1.bf16.msra.mxu0 0
    %704 = vmatprep.subr.bf16.mxu0 0
    %705 = vmatpush1.bf16.msra.mxu0 0
    %706 = vmatprep.subr.bf16.mxu0 0
    %707 = vmatpush1.bf16.msra.mxu0 0
    %708 = vmatprep.subr.bf16.mxu0 0
    %709 = vmatpush1.bf16.msra.mxu0 0
    %710 = vmatprep.subr.bf16.mxu0 0
    %711 = vmatpush1.bf16.msra.mxu0 0
    %712 = vmatprep.subr.bf16.mxu0 0
    %713 = vmatpush1.bf16.msra.mxu0 0
    %714 = vmatprep.subr.bf16.mxu0 0
    %715 = vmatpush1.bf16.msra.mxu0 0
    %716 = vmatprep.subr.bf16.mxu0 0
    %717 = vmatpush1.bf16.msra.mxu0 0
    %718 = vmatprep.mubr.bf16.mxu0 0
    %719 = vmatmul.mubr.bf16.gmra.mrb[0].mxu0 %v669
    %v720 = vpop.f32.mrb[0].mxu0
    %v721 = vadd.f32 %v580, %v720
    %v722 = vpop.f32.mrb[0].mxu0
    %v723 = vpop.f32.mrb[0].mxu0
    %v724 = vadd.f32 %v585, %v723
    %v725 = vpop.f32.mrb[0].mxu0
    %726 = vmatprep.mubr.bf16.mxu0 0
    %727 = vmatmul.mubr.bf16.gmra.mrb[0].mxu0 %v672
    %v728 = vpop.f32.mrb[0].mxu0
    %v729 = vadd.f32 %v590, %v728
    %v730 = vpop.f32.mrb[0].mxu0
    %v731 = vpop.f32.mrb[0].mxu0
    %v732 = vadd.f32 %v595, %v731
    %v733 = vpop.f32.mrb[0].mxu0
    %734 = vmatprep.mubr.bf16.mxu0 0
    %735 = vmatmul.mubr.bf16.gmra.mrb[0].mxu0 %v675
    %v736 = vpop.f32.mrb[0].mxu0
    %v737 = vadd.f32 %v600, %v736
    %v738 = vpop.f32.mrb[0].mxu0
    %v739 = vpop.f32.mrb[0].mxu0
    %v740 = vadd.f32 %v605, %v739
    %v741 = vpop.f32.mrb[0].mxu0
    %742 = vmatprep.mubr.bf16.mxu0 0
    %743 = vmatmul.mubr.bf16.gmra.mrb[0].mxu0 %v678
    %v744 = vpop.f32.mrb[0].mxu0
    %v745 = vadd.f32 %v610, %v744
    %v746 = vpop.f32.mrb[0].mxu0
    %v747 = vpop.f32.mrb[0].mxu0
    %v748 = vadd.f32 %v615, %v747
    %v749 = vpop.f32.mrb[0].mxu0
    %750 = vmatprep.mubr.bf16.mxu0 0
    %751 = vmatmul.mubr.bf16.gmra.mrb[0].mxu0 %v681
    %v752 = vpop.f32.mrb[0].mxu0
    %v753 = vadd.f32 %v620, %v752
    %v754 = vpop.f32.mrb[0].mxu0
    %v755 = vpop.f32.mrb[0].mxu0
    %v756 = vadd.f32 %v625, %v755
    %v757 = vpop.f32.mrb[0].mxu0
    %758 = vmatprep.mubr.bf16.mxu0 0
    %759 = vmatmul.mubr.bf16.gmra.mrb[0].mxu0 %v684
    %v760 = vpop.f32.mrb[0].mxu0
    %v761 = vadd.f32 %v630, %v760
    %v762 = vpop.f32.mrb[0].mxu0
    %v763 = vpop.f32.mrb[0].mxu0
    %v764 = vadd.f32 %v635, %v763
    %v765 = vpop.f32.mrb[0].mxu0
    %766 = vdwg.mxu0
    %v767 = vpack.c.bf16 %v724, %v721
    %v768 = vpack.c.bf16 %v732, %v729
    %v769 = vpack.c.bf16 %v740, %v737
    %v770 = vpack.c.bf16 %v748, %v745
    %v771 = vpack.c.bf16 %v756, %v753
    %v772 = vpack.c.bf16 %v764, %v761
    %773 = vxpose.xlu0.c.b16.start [1/8] %v767, 128
    %774 = vxpose.xlu0.c.b16.cont [2/8] 0, 128
    %775 = vxpose.xlu0.c.b16.cont [3/8] 0, 128
    %776 = vxpose.xlu0.c.b16.cont [4/8] 0, 128
    %777 = vxpose.xlu0.c.b16.cont [5/8] 0, 128
    %778 = vxpose.xlu0.c.b16.cont [6/8] 0, 128
    %779 = vxpose.xlu0.c.b16.cont [7/8] 0, 128
    %780 = vxpose.xlu0.c.b16.end [8/8] 0, 128
    %v781 = vpop.trf.xlu0
    %v782 = vpop.trf.xlu0
    %v783 = vpop.trf.xlu0
    %v784 = vpop.trf.xlu0
    %v785 = vpop.trf.xlu0
    %v786 = vpop.trf.xlu0
    %v787 = vpop.trf.xlu0
    %v788 = vpop.trf.xlu0
    %vm789 = vcmask 64512
    %v791 = vsel %vm789, %v781, 0
    %v794 = vsel %vm789, %v782, 0
    %v797 = vsel %vm789, %v783, 0
    %v800 = vsel %vm789, %v784, 0
    %v803 = vsel %vm789, %v785, 0
    %v806 = vsel %vm789, %v786, 0
    %v809 = vsel %vm789, %v787, 0
    %v812 = vsel %vm789, %v788, 0
    %vm814 = vcmask 1043456
    %v816 = vsel %vm814, %v769, 0
    %818 = vmatprep.subr.bf16.mxu0 0
    %819 = vmatpush1.bf16.msra.mxu0 %v816
    %820 = vmatprep.subr.bf16.mxu0 0
    %821 = vmatpush1.bf16.msra.mxu0 0
    %822 = vmatprep.subr.bf16.mxu0 0
    %823 = vmatpush1.bf16.msra.mxu0 0
    %824 = vmatprep.subr.bf16.mxu0 0
    %825 = vmatpush1.bf16.msra.mxu0 0
    %826 = vmatprep.subr.bf16.mxu0 0
    %827 = vmatpush1.bf16.msra.mxu0 0
    %828 = vmatprep.subr.bf16.mxu0 0
    %829 = vmatpush1.bf16.msra.mxu0 0
    %830 = vmatprep.subr.bf16.mxu0 0
    %831 = vmatpush1.bf16.msra.mxu0 0
    %832 = vmatprep.subr.bf16.mxu0 0
    %833 = vmatpush1.bf16.msra.mxu0 0
    %834 = vmatprep.subr.bf16.mxu0 0
    %835 = vmatpush1.bf16.msra.mxu0 0
    %836 = vmatprep.subr.bf16.mxu0 0
    %837 = vmatpush1.bf16.msra.mxu0 0
    %838 = vmatprep.subr.bf16.mxu0 0
    %839 = vmatpush1.bf16.msra.mxu0 0
    %840 = vmatprep.subr.bf16.mxu0 0
    %841 = vmatpush1.bf16.msra.mxu0 0
    %842 = vmatprep.subr.bf16.mxu0 0
    %843 = vmatpush1.bf16.msra.mxu0 0
    %844 = vmatprep.subr.bf16.mxu0 0
    %845 = vmatpush1.bf16.msra.mxu0 0
    %846 = vmatprep.subr.bf16.mxu0 0
    %847 = vmatpush1.bf16.msra.mxu0 0
    %848 = vmatprep.subr.bf16.mxu0 0
    %849 = vmatpush1.bf16.msra.mxu0 0
    %850 = vmatprep.mubr.bf16.mxu0 0
    %851 = vmatmul.mubr.bf16.gmra.mrb[0].mxu0 %v791
    %v852 = vpop.f32.mrb[0].mxu0
    %v853 = vadd.f32 0.0, %v852
    %v854 = vpop.f32.mrb[0].mxu0
    %v855 = vpop.f32.mrb[0].mxu0
    %v856 = vadd.f32 0.0, %v855
    %v857 = vpop.f32.mrb[0].mxu0
    %858 = vmatprep.mubr.bf16.mxu0 0
    %859 = vmatmul.mubr.bf16.gmra.mrb[0].mxu0 %v794
    %v860 = vpop.f32.mrb[0].mxu0
    %v861 = vadd.f32 0.0, %v860
    %v862 = vpop.f32.mrb[0].mxu0
    %v863 = vpop.f32.mrb[0].mxu0
    %v864 = vadd.f32 0.0, %v863
    %v865 = vpop.f32.mrb[0].mxu0
    %866 = vmatprep.mubr.bf16.mxu0 0
    %867 = vmatmul.mubr.bf16.gmra.mrb[0].mxu0 %v797
    %v868 = vpop.f32.mrb[0].mxu0
    %v869 = vadd.f32 0.0, %v868
    %v870 = vpop.f32.mrb[0].mxu0
    %v871 = vpop.f32.mrb[0].mxu0
    %v872 = vadd.f32 0.0, %v871
    %v873 = vpop.f32.mrb[0].mxu0
    %874 = vmatprep.mubr.bf16.mxu0 0
    %875 = vmatmul.mubr.bf16.gmra.mrb[0].mxu0 %v800
    %v876 = vpop.f32.mrb[0].mxu0
    %v877 = vadd.f32 0.0, %v876
    %v878 = vpop.f32.mrb[0].mxu0
    %v879 = vpop.f32.mrb[0].mxu0
    %v880 = vadd.f32 0.0, %v879
    %v881 = vpop.f32.mrb[0].mxu0
    %882 = vmatprep.mubr.bf16.mxu0 0
    %883 = vmatmul.mubr.bf16.gmra.mrb[0].mxu0 %v803
    %v884 = vpop.f32.mrb[0].mxu0
    %v885 = vadd.f32 0.0, %v884
    %v886 = vpop.f32.mrb[0].mxu0
    %v887 = vpop.f32.mrb[0].mxu0
    %v888 = vadd.f32 0.0, %v887
    %v889 = vpop.f32.mrb[0].mxu0
    %890 = vmatprep.mubr.bf16.mxu0 0
    %891 = vmatmul.mubr.bf16.gmra.mrb[0].mxu0 %v806
    %v892 = vpop.f32.mrb[0].mxu0
    %v893 = vadd.f32 0.0, %v892
    %v894 = vpop.f32.mrb[0].mxu0
    %v895 = vpop.f32.mrb[0].mxu0
    %v896 = vadd.f32 0.0, %v895
    %v897 = vpop.f32.mrb[0].mxu0
    %898 = vmatprep.mubr.bf16.mxu0 0
    %899 = vmatmul.mubr.bf16.gmra.mrb[0].mxu0 %v809
    %v900 = vpop.f32.mrb[0].mxu0
    %v901 = vadd.f32 0.0, %v900
    %v902 = vpop.f32.mrb[0].mxu0
    %v903 = vpop.f32.mrb[0].mxu0
    %v904 = vadd.f32 0.0, %v903
    %v905 = vpop.f32.mrb[0].mxu0
    %906 = vmatprep.mubr.bf16.mxu0 0
    %907 = vmatmul.mubr.bf16.gmra.mrb[0].mxu0 %v812
    %v908 = vpop.f32.mrb[0].mxu0
    %v909 = vadd.f32 0.0, %v908
    %v910 = vpop.f32.mrb[0].mxu0
    %v911 = vpop.f32.mrb[0].mxu0
    %v912 = vadd.f32 0.0, %v911
    %v913 = vpop.f32.mrb[0].mxu0
    %914 = vdwg.mxu0
    %v916 = vrot.slane %v767, 4
    %918 = vxpose.xlu0.c.b16.start [1/8] %v916, 128
    %919 = vxpose.xlu0.c.b16.cont [2/8] 0, 128
    %920 = vxpose.xlu0.c.b16.cont [3/8] 0, 128
    %921 = vxpose.xlu0.c.b16.cont [4/8] 0, 128
    %922 = vxpose.xlu0.c.b16.cont [5/8] 0, 128
    %923 = vxpose.xlu0.c.b16.cont [6/8] 0, 128
    %924 = vxpose.xlu0.c.b16.cont [7/8] 0, 128
    %925 = vxpose.xlu0.c.b16.end [8/8] 0, 128
    %v926 = vpop.trf.xlu0
    %v927 = vpop.trf.xlu0
    %v928 = vpop.trf.xlu0
    %v929 = vpop.trf.xlu0
    %v930 = vpop.trf.xlu0
    %v931 = vpop.trf.xlu0
    %v932 = vpop.trf.xlu0
    %v933 = vpop.trf.xlu0
    %v935 = vrot.slane %v769, 4
    %v937 = vsel %vm789, %v926, 0
    %v940 = vsel %vm789, %v927, 0
    %v943 = vsel %vm789, %v928, 0
    %v946 = vsel %vm789, %v929, 0
    %v949 = vsel %vm789, %v930, 0
    %v952 = vsel %vm789, %v931, 0
    %v955 = vsel %vm789, %v932, 0
    %v958 = vsel %vm789, %v933, 0
    %v961 = vsel %vm814, %v935, 0
    %963 = vmatprep.subr.bf16.mxu0 0
    %964 = vmatpush1.bf16.msra.mxu0 %v961
    %965 = vmatprep.subr.bf16.mxu0 0
    %966 = vmatpush1.bf16.msra.mxu0 0
    %967 = vmatprep.subr.bf16.mxu0 0
    %968 = vmatpush1.bf16.msra.mxu0 0
    %969 = vmatprep.subr.bf16.mxu0 0
    %970 = vmatpush1.bf16.msra.mxu0 0
    %971 = vmatprep.subr.bf16.mxu0 0
    %972 = vmatpush1.bf16.msra.mxu0 0
    %973 = vmatprep.subr.bf16.mxu0 0
    %974 = vmatpush1.bf16.msra.mxu0 0
    %975 = vmatprep.subr.bf16.mxu0 0
    %976 = vmatpush1.bf16.msra.mxu0 0
    %977 = vmatprep.subr.bf16.mxu0 0
    %978 = vmatpush1.bf16.msra.mxu0 0
    %979 = vmatprep.subr.bf16.mxu0 0
    %980 = vmatpush1.bf16.msra.mxu0 0
    %981 = vmatprep.subr.bf16.mxu0 0
    %982 = vmatpush1.bf16.msra.mxu0 0
    %983 = vmatprep.subr.bf16.mxu0 0
    %984 = vmatpush1.bf16.msra.mxu0 0
    %985 = vmatprep.subr.bf16.mxu0 0
    %986 = vmatpush1.bf16.msra.mxu0 0
    %987 = vmatprep.subr.bf16.mxu0 0
    %988 = vmatpush1.bf16.msra.mxu0 0
    %989 = vmatprep.subr.bf16.mxu0 0
    %990 = vmatpush1.bf16.msra.mxu0 0
    %991 = vmatprep.subr.bf16.mxu0 0
    %992 = vmatpush1.bf16.msra.mxu0 0
    %993 = vmatprep.subr.bf16.mxu0 0
    %994 = vmatpush1.bf16.msra.mxu0 0
    %995 = vmatprep.mubr.bf16.mxu0 0
    %996 = vmatmul.mubr.bf16.gmra.mrb[0].mxu0 %v937
    %v997 = vpop.f32.mrb[0].mxu0
    %v998 = vadd.f32 0.0, %v997
    %v999 = vpop.f32.mrb[0].mxu0
    %v1000 = vpop.f32.mrb[0].mxu0
    %v1001 = vadd.f32 0.0, %v1000
    %v1002 = vpop.f32.mrb[0].mxu0
    %1003 = vmatprep.mubr.bf16.mxu0 0
    %1004 = vmatmul.mubr.bf16.gmra.mrb[0].mxu0 %v940
    %v1005 = vpop.f32.mrb[0].mxu0
    %v1006 = vadd.f32 0.0, %v1005
    %v1007 = vpop.f32.mrb[0].mxu0
    %v1008 = vpop.f32.mrb[0].mxu0
    %v1009 = vadd.f32 0.0, %v1008
    %v1010 = vpop.f32.mrb[0].mxu0
    %1011 = vmatprep.mubr.bf16.mxu0 0
    %1012 = vmatmul.mubr.bf16.gmra.mrb[0].mxu0 %v943
    %v1013 = vpop.f32.mrb[0].mxu0
    %v1014 = vadd.f32 0.0, %v1013
    %v1015 = vpop.f32.mrb[0].mxu0
    %v1016 = vpop.f32.mrb[0].mxu0
    %v1017 = vadd.f32 0.0, %v1016
    %v1018 = vpop.f32.mrb[0].mxu0
    %1019 = vmatprep.mubr.bf16.mxu0 0
    %1020 = vmatmul.mubr.bf16.gmra.mrb[0].mxu0 %v946
    %v1021 = vpop.f32.mrb[0].mxu0
    %v1022 = vadd.f32 0.0, %v1021
    %v1023 = vpop.f32.mrb[0].mxu0
    %v1024 = vpop.f32.mrb[0].mxu0
    %v1025 = vadd.f32 0.0, %v1024
    %v1026 = vpop.f32.mrb[0].mxu0
    %1027 = vmatprep.mubr.bf16.mxu0 0
    %1028 = vmatmul.mubr.bf16.gmra.mrb[0].mxu0 %v949
    %v1029 = vpop.f32.mrb[0].mxu0
    %v1030 = vadd.f32 0.0, %v1029
    %v1031 = vpop.f32.mrb[0].mxu0
    %v1032 = vpop.f32.mrb[0].mxu0
    %v1033 = vadd.f32 0.0, %v1032
    %v1034 = vpop.f32.mrb[0].mxu0
    %1035 = vmatprep.mubr.bf16.mxu0 0
    %1036 = vmatmul.mubr.bf16.gmra.mrb[0].mxu0 %v952
    %v1037 = vpop.f32.mrb[0].mxu0
    %v1038 = vadd.f32 0.0, %v1037
    %v1039 = vpop.f32.mrb[0].mxu0
    %v1040 = vpop.f32.mrb[0].mxu0
    %v1041 = vadd.f32 0.0, %v1040
    %v1042 = vpop.f32.mrb[0].mxu0
    %1043 = vmatprep.mubr.bf16.mxu0 0
    %1044 = vmatmul.mubr.bf16.gmra.mrb[0].mxu0 %v955
    %v1045 = vpop.f32.mrb[0].mxu0
    %v1046 = vadd.f32 0.0, %v1045
    %v1047 = vpop.f32.mrb[0].mxu0
    %v1048 = vpop.f32.mrb[0].mxu0
    %v1049 = vadd.f32 0.0, %v1048
    %v1050 = vpop.f32.mrb[0].mxu0
    %1051 = vmatprep.mubr.bf16.mxu0 0
    %1052 = vmatmul.mubr.bf16.gmra.mrb[0].mxu0 %v958
    %v1053 = vpop.f32.mrb[0].mxu0
    %v1054 = vadd.f32 0.0, %v1053
    %v1055 = vpop.f32.mrb[0].mxu0
    %v1056 = vpop.f32.mrb[0].mxu0
    %v1057 = vadd.f32 0.0, %v1056
    %v1058 = vpop.f32.mrb[0].mxu0
    %1059 = vdwg.mxu0
    %1060 = vxpose.xlu0.c.b16.start [1/8] %v768, 128
    %1061 = vxpose.xlu0.c.b16.cont [2/8] 0, 128
    %1062 = vxpose.xlu0.c.b16.cont [3/8] 0, 128
    %1063 = vxpose.xlu0.c.b16.cont [4/8] 0, 128
    %1064 = vxpose.xlu0.c.b16.cont [5/8] 0, 128
    %1065 = vxpose.xlu0.c.b16.cont [6/8] 0, 128
    %1066 = vxpose.xlu0.c.b16.cont [7/8] 0, 128
    %1067 = vxpose.xlu0.c.b16.end [8/8] 0, 128
    %v1068 = vpop.trf.xlu0
    %v1069 = vpop.trf.xlu0
    %v1070 = vpop.trf.xlu0
    %v1071 = vpop.trf.xlu0
    %v1072 = vpop.trf.xlu0
    %v1073 = vpop.trf.xlu0
    %v1074 = vpop.trf.xlu0
    %v1075 = vpop.trf.xlu0
    %v1077 = vsel %vm789, %v1068, 0
    %v1080 = vsel %vm789, %v1069, 0
    %v1083 = vsel %vm789, %v1070, 0
    %v1086 = vsel %vm789, %v1071, 0
    %v1089 = vsel %vm789, %v1072, 0
    %v1092 = vsel %vm789, %v1073, 0
    %v1095 = vsel %vm789, %v1074, 0
    %v1098 = vsel %vm789, %v1075, 0
    %v1101 = vsel %vm814, %v770, 0
    %1103 = vmatprep.subr.bf16.mxu0 0
    %1104 = vmatpush1.bf16.msra.mxu0 %v1101
    %1105 = vmatprep.subr.bf16.mxu0 0
    %1106 = vmatpush1.bf16.msra.mxu0 0
    %1107 = vmatprep.subr.bf16.mxu0 0
    %1108 = vmatpush1.bf16.msra.mxu0 0
    %1109 = vmatprep.subr.bf16.mxu0 0
    %1110 = vmatpush1.bf16.msra.mxu0 0
    %1111 = vmatprep.subr.bf16.mxu0 0
    %1112 = vmatpush1.bf16.msra.mxu0 0
    %1113 = vmatprep.subr.bf16.mxu0 0
    %1114 = vmatpush1.bf16.msra.mxu0 0
    %1115 = vmatprep.subr.bf16.mxu0 0
    %1116 = vmatpush1.bf16.msra.mxu0 0
    %1117 = vmatprep.subr.bf16.mxu0 0
    %1118 = vmatpush1.bf16.msra.mxu0 0
    %1119 = vmatprep.subr.bf16.mxu0 0
    %1120 = vmatpush1.bf16.msra.mxu0 0
    %1121 = vmatprep.subr.bf16.mxu0 0
    %1122 = vmatpush1.bf16.msra.mxu0 0
    %1123 = vmatprep.subr.bf16.mxu0 0
    %1124 = vmatpush1.bf16.msra.mxu0 0
    %1125 = vmatprep.subr.bf16.mxu0 0
    %1126 = vmatpush1.bf16.msra.mxu0 0
    %1127 = vmatprep.subr.bf16.mxu0 0
    %1128 = vmatpush1.bf16.msra.mxu0 0
    %1129 = vmatprep.subr.bf16.mxu0 0
    %1130 = vmatpush1.bf16.msra.mxu0 0
    %1131 = vmatprep.subr.bf16.mxu0 0
    %1132 = vmatpush1.bf16.msra.mxu0 0
    %1133 = vmatprep.subr.bf16.mxu0 0
    %1134 = vmatpush1.bf16.msra.mxu0 0
    %1135 = vmatprep.mubr.bf16.mxu0 0
    %1136 = vmatmul.mubr.bf16.gmra.mrb[0].mxu0 %v1077
    %v1137 = vpop.f32.mrb[0].mxu0
    %v1138 = vadd.f32 0.0, %v1137
    %v1139 = vpop.f32.mrb[0].mxu0
    %v1140 = vpop.f32.mrb[0].mxu0
    %v1141 = vadd.f32 0.0, %v1140
    %v1142 = vpop.f32.mrb[0].mxu0
    %1143 = vmatprep.mubr.bf16.mxu0 0
    %1144 = vmatmul.mubr.bf16.gmra.mrb[0].mxu0 %v1080
    %v1145 = vpop.f32.mrb[0].mxu0
    %v1146 = vadd.f32 0.0, %v1145
    %v1147 = vpop.f32.mrb[0].mxu0
    %v1148 = vpop.f32.mrb[0].mxu0
    %v1149 = vadd.f32 0.0, %v1148
    %v1150 = vpop.f32.mrb[0].mxu0
    %1151 = vmatprep.mubr.bf16.mxu0 0
    %1152 = vmatmul.mubr.bf16.gmra.mrb[0].mxu0 %v1083
    %v1153 = vpop.f32.mrb[0].mxu0
    %v1154 = vadd.f32 0.0, %v1153
    %v1155 = vpop.f32.mrb[0].mxu0
    %v1156 = vpop.f32.mrb[0].mxu0
    %v1157 = vadd.f32 0.0, %v1156
    %v1158 = vpop.f32.mrb[0].mxu0
    %1159 = vmatprep.mubr.bf16.mxu0 0
    %1160 = vmatmul.mubr.bf16.gmra.mrb[0].mxu0 %v1086
    %v1161 = vpop.f32.mrb[0].mxu0
    %v1162 = vadd.f32 0.0, %v1161
    %v1163 = vpop.f32.mrb[0].mxu0
    %v1164 = vpop.f32.mrb[0].mxu0
    %v1165 = vadd.f32 0.0, %v1164
    %v1166 = vpop.f32.mrb[0].mxu0
    %1167 = vmatprep.mubr.bf16.mxu0 0
    %1168 = vmatmul.mubr.bf16.gmra.mrb[0].mxu0 %v1089
    %v1169 = vpop.f32.mrb[0].mxu0
    %v1170 = vadd.f32 0.0, %v1169
    %v1171 = vpop.f32.mrb[0].mxu0
    %v1172 = vpop.f32.mrb[0].mxu0
    %v1173 = vadd.f32 0.0, %v1172
    %v1174 = vpop.f32.mrb[0].mxu0
    %1175 = vmatprep.mubr.bf16.mxu0 0
    %1176 = vmatmul.mubr.bf16.gmra.mrb[0].mxu0 %v1092
    %v1177 = vpop.f32.mrb[0].mxu0
    %v1178 = vadd.f32 0.0, %v1177
    %v1179 = vpop.f32.mrb[0].mxu0
    %v1180 = vpop.f32.mrb[0].mxu0
    %v1181 = vadd.f32 0.0, %v1180
    %v1182 = vpop.f32.mrb[0].mxu0
    %1183 = vmatprep.mubr.bf16.mxu0 0
    %1184 = vmatmul.mubr.bf16.gmra.mrb[0].mxu0 %v1095
    %v1185 = vpop.f32.mrb[0].mxu0
    %v1186 = vadd.f32 0.0, %v1185
    %v1187 = vpop.f32.mrb[0].mxu0
    %v1188 = vpop.f32.mrb[0].mxu0
    %v1189 = vadd.f32 0.0, %v1188
    %v1190 = vpop.f32.mrb[0].mxu0
    %1191 = vmatprep.mubr.bf16.mxu0 0
    %1192 = vmatmul.mubr.bf16.gmra.mrb[0].mxu0 %v1098
    %v1193 = vpop.f32.mrb[0].mxu0
    %v1194 = vadd.f32 0.0, %v1193
    %v1195 = vpop.f32.mrb[0].mxu0
    %v1196 = vpop.f32.mrb[0].mxu0
    %v1197 = vadd.f32 0.0, %v1196
    %v1198 = vpop.f32.mrb[0].mxu0
    %1199 = vdwg.mxu0
    %v1201 = vrot.slane %v768, 4
    %1203 = vxpose.xlu0.c.b16.start [1/8] %v1201, 128
    %1204 = vxpose.xlu0.c.b16.cont [2/8] 0, 128
    %1205 = vxpose.xlu0.c.b16.cont [3/8] 0, 128
    %1206 = vxpose.xlu0.c.b16.cont [4/8] 0, 128
    %1207 = vxpose.xlu0.c.b16.cont [5/8] 0, 128
    %1208 = vxpose.xlu0.c.b16.cont [6/8] 0, 128
    %1209 = vxpose.xlu0.c.b16.cont [7/8] 0, 128
    %1210 = vxpose.xlu0.c.b16.end [8/8] 0, 128
    %v1211 = vpop.trf.xlu0
    %v1212 = vpop.trf.xlu0
    %v1213 = vpop.trf.xlu0
    %v1214 = vpop.trf.xlu0
    %v1215 = vpop.trf.xlu0
    %v1216 = vpop.trf.xlu0
    %v1217 = vpop.trf.xlu0
    %v1218 = vpop.trf.xlu0
    %v1220 = vrot.slane %v770, 4
    %v1222 = vsel %vm789, %v1211, 0
    %v1225 = vsel %vm789, %v1212, 0
    %v1228 = vsel %vm789, %v1213, 0
    %v1231 = vsel %vm789, %v1214, 0
    %v1234 = vsel %vm789, %v1215, 0
    %v1237 = vsel %vm789, %v1216, 0
    %v1240 = vsel %vm789, %v1217, 0
    %v1243 = vsel %vm789, %v1218, 0
    %v1246 = vsel %vm814, %v1220, 0
    %1248 = vmatprep.subr.bf16.mxu0 0
    %1249 = vmatpush1.bf16.msra.mxu0 %v1246
    %1250 = vmatprep.subr.bf16.mxu0 0
    %1251 = vmatpush1.bf16.msra.mxu0 0
    %1252 = vmatprep.subr.bf16.mxu0 0
    %1253 = vmatpush1.bf16.msra.mxu0 0
    %1254 = vmatprep.subr.bf16.mxu0 0
    %1255 = vmatpush1.bf16.msra.mxu0 0
    %1256 = vmatprep.subr.bf16.mxu0 0
    %1257 = vmatpush1.bf16.msra.mxu0 0
    %1258 = vmatprep.subr.bf16.mxu0 0
    %1259 = vmatpush1.bf16.msra.mxu0 0
    %1260 = vmatprep.subr.bf16.mxu0 0
    %1261 = vmatpush1.bf16.msra.mxu0 0
    %1262 = vmatprep.subr.bf16.mxu0 0
    %1263 = vmatpush1.bf16.msra.mxu0 0
    %1264 = vmatprep.subr.bf16.mxu0 0
    %1265 = vmatpush1.bf16.msra.mxu0 0
    %1266 = vmatprep.subr.bf16.mxu0 0
    %1267 = vmatpush1.bf16.msra.mxu0 0
    %1268 = vmatprep.subr.bf16.mxu0 0
    %1269 = vmatpush1.bf16.msra.mxu0 0
    %1270 = vmatprep.subr.bf16.mxu0 0
    %1271 = vmatpush1.bf16.msra.mxu0 0
    %1272 = vmatprep.subr.bf16.mxu0 0
    %1273 = vmatpush1.bf16.msra.mxu0 0
    %1274 = vmatprep.subr.bf16.mxu0 0
    %1275 = vmatpush1.bf16.msra.mxu0 0
    %1276 = vmatprep.subr.bf16.mxu0 0
    %1277 = vmatpush1.bf16.msra.mxu0 0
    %1278 = vmatprep.subr.bf16.mxu0 0
    %1279 = vmatpush1.bf16.msra.mxu0 0
    %1280 = vmatprep.mubr.bf16.mxu0 0
    %1281 = vmatmul.mubr.bf16.gmra.mrb[0].mxu0 %v1222
    %v1282 = vpop.f32.mrb[0].mxu0
    %v1283 = vadd.f32 0.0, %v1282
    %v1284 = vpop.f32.mrb[0].mxu0
    %v1285 = vpop.f32.mrb[0].mxu0
    %v1286 = vadd.f32 0.0, %v1285
    %v1287 = vpop.f32.mrb[0].mxu0
    %1288 = vmatprep.mubr.bf16.mxu0 0
    %1289 = vmatmul.mubr.bf16.gmra.mrb[0].mxu0 %v1225
    %v1290 = vpop.f32.mrb[0].mxu0
    %v1291 = vadd.f32 0.0, %v1290
    %v1292 = vpop.f32.mrb[0].mxu0
    %v1293 = vpop.f32.mrb[0].mxu0
    %v1294 = vadd.f32 0.0, %v1293
    %v1295 = vpop.f32.mrb[0].mxu0
    %1296 = vmatprep.mubr.bf16.mxu0 0
    %1297 = vmatmul.mubr.bf16.gmra.mrb[0].mxu0 %v1228
    %v1298 = vpop.f32.mrb[0].mxu0
    %v1299 = vadd.f32 0.0, %v1298
    %v1300 = vpop.f32.mrb[0].mxu0
    %v1301 = vpop.f32.mrb[0].mxu0
    %v1302 = vadd.f32 0.0, %v1301
    %v1303 = vpop.f32.mrb[0].mxu0
    %1304 = vmatprep.mubr.bf16.mxu0 0
    %1305 = vmatmul.mubr.bf16.gmra.mrb[0].mxu0 %v1231
    %v1306 = vpop.f32.mrb[0].mxu0
    %v1307 = vadd.f32 0.0, %v1306
    %v1308 = vpop.f32.mrb[0].mxu0
    %v1309 = vpop.f32.mrb[0].mxu0
    %v1310 = vadd.f32 0.0, %v1309
    %v1311 = vpop.f32.mrb[0].mxu0
    %1312 = vmatprep.mubr.bf16.mxu0 0
    %1313 = vmatmul.mubr.bf16.gmra.mrb[0].mxu0 %v1234
    %v1314 = vpop.f32.mrb[0].mxu0
    %v1315 = vadd.f32 0.0, %v1314
    %v1316 = vpop.f32.mrb[0].mxu0
    %v1317 = vpop.f32.mrb[0].mxu0
    %v1318 = vadd.f32 0.0, %v1317
    %v1319 = vpop.f32.mrb[0].mxu0
    %1320 = vmatprep.mubr.bf16.mxu0 0
    %1321 = vmatmul.mubr.bf16.gmra.mrb[0].mxu0 %v1237
    %v1322 = vpop.f32.mrb[0].mxu0
    %v1323 = vadd.f32 0.0, %v1322
    %v1324 = vpop.f32.mrb[0].mxu0
    %v1325 = vpop.f32.mrb[0].mxu0
    %v1326 = vadd.f32 0.0, %v1325
    %v1327 = vpop.f32.mrb[0].mxu0
    %1328 = vmatprep.mubr.bf16.mxu0 0
    %1329 = vmatmul.mubr.bf16.gmra.mrb[0].mxu0 %v1240
    %v1330 = vpop.f32.mrb[0].mxu0
    %v1331 = vadd.f32 0.0, %v1330
    %v1332 = vpop.f32.mrb[0].mxu0
    %v1333 = vpop.f32.mrb[0].mxu0
    %v1334 = vadd.f32 0.0, %v1333
    %v1335 = vpop.f32.mrb[0].mxu0
    %1336 = vmatprep.mubr.bf16.mxu0 0
    %1337 = vmatmul.mubr.bf16.gmra.mrb[0].mxu0 %v1243
    %v1338 = vpop.f32.mrb[0].mxu0
    %v1339 = vadd.f32 0.0, %v1338
    %v1340 = vpop.f32.mrb[0].mxu0
    %v1341 = vpop.f32.mrb[0].mxu0
    %v1342 = vadd.f32 0.0, %v1341
    %v1343 = vpop.f32.mrb[0].mxu0
    %1344 = vdwg.mxu0
    %v1345 = vld [vmem:[%s10] sm:$0xf]
    %v1346 = vld [vmem:[%s10 + $0x4] sm:$0xf]
    %v1347 = vld [vmem:[%s10 + $0x8] sm:$0xf]
    %v1348 = vld [vmem:[%s10 + $0xc] sm:$0xf]
    %v1349 = vld [vmem:[%s10 + $0x10] sm:$0xf]
    %v1350 = vld [vmem:[%s10 + $0x14] sm:$0xf]
    %v1351 = vld [vmem:[%s10 + $0x18] sm:$0xf]
    %v1352 = vld [vmem:[%s10 + $0x1c] sm:$0xf]
    %v1353 = vld [vmem:[%s10 + $0x20] sm:$0xf]
    %v1354 = vld [vmem:[%s10 + $0x24] sm:$0xf]
    %v1355 = vld [vmem:[%s10 + $0x28] sm:$0xf]
    %v1356 = vld [vmem:[%s10 + $0x2c] sm:$0xf]
    %v1357 = vld [vmem:[%s10 + $0x30] sm:$0xf]
    %v1358 = vld [vmem:[%s10 + $0x34] sm:$0xf]
    %v1359 = vld [vmem:[%s10 + $0x38] sm:$0xf]
    %v1360 = vld [vmem:[%s10 + $0x3c] sm:$0xf]
    %v1361 = vld [vmem:[%s10 + $0x40] sm:$0xf]
    %v1362 = vld [vmem:[%s10 + $0x44] sm:$0xf]
    %v1363 = vld [vmem:[%s10 + $0x48] sm:$0xf]
    %v1364 = vld [vmem:[%s10 + $0x4c] sm:$0xf]
    %v1365 = vld [vmem:[%s10 + $0x50] sm:$0xf]
    %v1366 = vld [vmem:[%s10 + $0x54] sm:$0xf]
    %v1367 = vld [vmem:[%s10 + $0x58] sm:$0xf]
    %v1368 = vld [vmem:[%s10 + $0x5c] sm:$0xf]
    %v1369 = vld [vmem:[%s10 + $0x60] sm:$0xf]
    %v1370 = vld [vmem:[%s10 + $0x64] sm:$0xf]
    %v1371 = vld [vmem:[%s10 + $0x68] sm:$0xf]
    %v1372 = vld [vmem:[%s10 + $0x6c] sm:$0xf]
    %v1373 = vld [vmem:[%s10 + $0x70] sm:$0xf]
    %v1374 = vld [vmem:[%s10 + $0x74] sm:$0xf]
    %v1375 = vld [vmem:[%s10 + $0x78] sm:$0xf]
    %v1376 = vld [vmem:[%s10 + $0x7c] sm:$0xf]
    %v1377 = vld [vmem:[%s10 + $0x80] sm:$0xf]
    %v1378 = vld [vmem:[%s10 + $0x84] sm:$0xf]
    %v1379 = vld [vmem:[%s10 + $0x88] sm:$0xf]
    %v1380 = vld [vmem:[%s10 + $0x8c] sm:$0xf]
    %v1381 = vld [vmem:[%s10 + $0x90] sm:$0xf]
    %v1382 = vld [vmem:[%s10 + $0x94] sm:$0xf]
    %v1383 = vld [vmem:[%s10 + $0x98] sm:$0xf]
    %v1384 = vld [vmem:[%s10 + $0x9c] sm:$0xf]
    %v1385 = vld [vmem:[%s10 + $0xa0] sm:$0xf]
    %v1386 = vld [vmem:[%s10 + $0xa4] sm:$0xf]
    %v1387 = vld [vmem:[%s10 + $0xa8] sm:$0xf]
    %v1388 = vld [vmem:[%s10 + $0xac] sm:$0xf]
    %v1389 = vld [vmem:[%s10 + $0xb0] sm:$0xf]
    %v1390 = vld [vmem:[%s10 + $0xb4] sm:$0xf]
    %v1391 = vld [vmem:[%s10 + $0xb8] sm:$0xf]
    %v1392 = vld [vmem:[%s10 + $0xbc] sm:$0xf]
    %v1393 = vld [vmem:[%s10 + $0xc0] sm:$0xf]
    %v1394 = vld [vmem:[%s10 + $0xc4] sm:$0xf]
    %v1395 = vld [vmem:[%s10 + $0xc8] sm:$0xf]
    %v1396 = vld [vmem:[%s10 + $0xcc] sm:$0xf]
    %v1397 = vld [vmem:[%s10 + $0xd0] sm:$0xf]
    %v1398 = vld [vmem:[%s10 + $0xd4] sm:$0xf]
    %v1399 = vld [vmem:[%s10 + $0xd8] sm:$0xf]
    %v1400 = vld [vmem:[%s10 + $0xdc] sm:$0xf]
    %v1401 = vld [vmem:[%s10 + $0xe0] sm:$0xf]
    %v1402 = vld [vmem:[%s10 + $0xe4] sm:$0xf]
    %v1403 = vld [vmem:[%s10 + $0xe8] sm:$0xf]
    %v1404 = vld [vmem:[%s10 + $0xec] sm:$0xf]
    %v1405 = vld [vmem:[%s10 + $0xf0] sm:$0xf]
    %v1406 = vld [vmem:[%s10 + $0xf4] sm:$0xf]
    %v1407 = vld [vmem:[%s10 + $0xf8] sm:$0xf]
    %v1408 = vld [vmem:[%s10 + $0xfc] sm:$0xf]
    %v1409 = vunpack.c.l.bf16 %v1345
    %v1410 = vunpack.c.l.bf16 %v1346
    %v1411 = vunpack.c.l.bf16 %v1347
    %v1412 = vunpack.c.l.bf16 %v1348
    %v1413 = vunpack.c.l.bf16 %v1349
    %v1414 = vunpack.c.l.bf16 %v1350
    %v1415 = vunpack.c.l.bf16 %v1351
    %v1416 = vunpack.c.l.bf16 %v1352
    %v1417 = vunpack.c.l.bf16 %v1353
    %v1418 = vunpack.c.l.bf16 %v1354
    %v1419 = vunpack.c.l.bf16 %v1355
    %v1420 = vunpack.c.l.bf16 %v1356
    %v1421 = vunpack.c.l.bf16 %v1357
    %v1422 = vunpack.c.l.bf16 %v1358
    %v1423 = vunpack.c.l.bf16 %v1359
    %v1424 = vunpack.c.l.bf16 %v1360
    %v1425 = vunpack.c.l.bf16 %v1361
    %v1426 = vunpack.c.l.bf16 %v1362
    %v1427 = vunpack.c.l.bf16 %v1363
    %v1428 = vunpack.c.l.bf16 %v1364
    %v1429 = vunpack.c.l.bf16 %v1365
    %v1430 = vunpack.c.l.bf16 %v1366
    %v1431 = vunpack.c.l.bf16 %v1367
    %v1432 = vunpack.c.l.bf16 %v1368
    %v1433 = vunpack.c.l.bf16 %v1369
    %v1434 = vunpack.c.l.bf16 %v1370
    %v1435 = vunpack.c.l.bf16 %v1371
    %v1436 = vunpack.c.l.bf16 %v1372
    %v1437 = vunpack.c.l.bf16 %v1373
    %v1438 = vunpack.c.l.bf16 %v1374
    %v1439 = vunpack.c.l.bf16 %v1375
    %v1440 = vunpack.c.l.bf16 %v1376
    %v1441 = vunpack.c.l.bf16 %v1377
    %v1442 = vunpack.c.l.bf16 %v1378
    %v1443 = vunpack.c.l.bf16 %v1379
    %v1444 = vunpack.c.l.bf16 %v1380
    %v1445 = vunpack.c.l.bf16 %v1381
    %v1446 = vunpack.c.l.bf16 %v1382
    %v1447 = vunpack.c.l.bf16 %v1383
    %v1448 = vunpack.c.l.bf16 %v1384
    %v1449 = vunpack.c.l.bf16 %v1385
    %v1450 = vunpack.c.l.bf16 %v1386
    %v1451 = vunpack.c.l.bf16 %v1387
    %v1452 = vunpack.c.l.bf16 %v1388
    %v1453 = vunpack.c.l.bf16 %v1389
    %v1454 = vunpack.c.l.bf16 %v1390
    %v1455 = vunpack.c.l.bf16 %v1391
    %v1456 = vunpack.c.l.bf16 %v1392
    %v1457 = vunpack.c.l.bf16 %v1393
    %v1458 = vunpack.c.l.bf16 %v1394
    %v1459 = vunpack.c.l.bf16 %v1395
    %v1460 = vunpack.c.l.bf16 %v1396
    %v1461 = vunpack.c.l.bf16 %v1397
    %v1462 = vunpack.c.l.bf16 %v1398
    %v1463 = vunpack.c.l.bf16 %v1399
    %v1464 = vunpack.c.l.bf16 %v1400
    %v1465 = vunpack.c.l.bf16 %v1401
    %v1466 = vunpack.c.l.bf16 %v1402
    %v1467 = vunpack.c.l.bf16 %v1403
    %v1468 = vunpack.c.l.bf16 %v1404
    %v1469 = vunpack.c.l.bf16 %v1405
    %v1470 = vunpack.c.l.bf16 %v1406
    %v1471 = vunpack.c.l.bf16 %v1407
    %v1472 = vunpack.c.l.bf16 %v1408
    %v1473 = vadd.f32 %v853, %v1409
    %v1474 = vadd.f32 %v856, %v1410
    %v1475 = vadd.f32 %v861, %v1411
    %v1476 = vadd.f32 %v864, %v1412
    %v1477 = vadd.f32 %v869, %v1413
    %v1478 = vadd.f32 %v872, %v1414
    %v1479 = vadd.f32 %v877, %v1415
    %v1480 = vadd.f32 %v880, %v1416
    %v1481 = vadd.f32 %v885, %v1417
    %v1482 = vadd.f32 %v888, %v1418
    %v1483 = vadd.f32 %v893, %v1419
    %v1484 = vadd.f32 %v896, %v1420
    %v1485 = vadd.f32 %v901, %v1421
    %v1486 = vadd.f32 %v904, %v1422
    %v1487 = vadd.f32 %v909, %v1423
    %v1488 = vadd.f32 %v912, %v1424
    %v1489 = vadd.f32 %v998, %v1425
    %v1490 = vadd.f32 %v1001, %v1426
    %v1491 = vadd.f32 %v1006, %v1427
    %v1492 = vadd.f32 %v1009, %v1428
    %v1493 = vadd.f32 %v1014, %v1429
    %v1494 = vadd.f32 %v1017, %v1430
    %v1495 = vadd.f32 %v1022, %v1431
    %v1496 = vadd.f32 %v1025, %v1432
    %v1497 = vadd.f32 %v1030, %v1433
    %v1498 = vadd.f32 %v1033, %v1434
    %v1499 = vadd.f32 %v1038, %v1435
    %v1500 = vadd.f32 %v1041, %v1436
    %v1501 = vadd.f32 %v1046, %v1437
    %v1502 = vadd.f32 %v1049, %v1438
    %v1503 = vadd.f32 %v1054, %v1439
    %v1504 = vadd.f32 %v1057, %v1440
    %v1505 = vadd.f32 %v1138, %v1441
    %v1506 = vadd.f32 %v1141, %v1442
    %v1507 = vadd.f32 %v1146, %v1443
    %v1508 = vadd.f32 %v1149, %v1444
    %v1509 = vadd.f32 %v1154, %v1445
    %v1510 = vadd.f32 %v1157, %v1446
    %v1511 = vadd.f32 %v1162, %v1447
    %v1512 = vadd.f32 %v1165, %v1448
    %v1513 = vadd.f32 %v1170, %v1449
    %v1514 = vadd.f32 %v1173, %v1450
    %v1515 = vadd.f32 %v1178, %v1451
    %v1516 = vadd.f32 %v1181, %v1452
    %v1517 = vadd.f32 %v1186, %v1453
    %v1518 = vadd.f32 %v1189, %v1454
    %v1519 = vadd.f32 %v1194, %v1455
    %v1520 = vadd.f32 %v1197, %v1456
    %v1521 = vadd.f32 %v1283, %v1457
    %v1522 = vadd.f32 %v1286, %v1458
    %v1523 = vadd.f32 %v1291, %v1459
    %v1524 = vadd.f32 %v1294, %v1460
    %v1525 = vadd.f32 %v1299, %v1461
    %v1526 = vadd.f32 %v1302, %v1462
    %v1527 = vadd.f32 %v1307, %v1463
    %v1528 = vadd.f32 %v1310, %v1464
    %v1529 = vadd.f32 %v1315, %v1465
    %v1530 = vadd.f32 %v1318, %v1466
    %v1531 = vadd.f32 %v1323, %v1467
    %v1532 = vadd.f32 %v1326, %v1468
    %v1533 = vadd.f32 %v1331, %v1469
    %v1534 = vadd.f32 %v1334, %v1470
    %v1535 = vadd.f32 %v1339, %v1471
    %v1536 = vadd.f32 %v1342, %v1472
    %1537 = vmax.xlane.f32.xlu0 %v1473
    %v1538 = vpop.xlane.xlu0 %1537
    %1539 = vmax.xlane.f32.xlu0 %v1474
    %v1540 = vpop.xlane.xlu0 %1539
    %1541 = vmax.xlane.f32.xlu0 %v1475
    %v1542 = vpop.xlane.xlu0 %1541
    %1543 = vmax.xlane.f32.xlu0 %v1476
    %v1544 = vpop.xlane.xlu0 %1543
    %1545 = vmax.xlane.f32.xlu0 %v1477
    %v1546 = vpop.xlane.xlu0 %1545
    %1547 = vmax.xlane.f32.xlu0 %v1478
    %v1548 = vpop.xlane.xlu0 %1547
    %1549 = vmax.xlane.f32.xlu0 %v1479
    %v1550 = vpop.xlane.xlu0 %1549
    %1551 = vmax.xlane.f32.xlu0 %v1480
    %v1552 = vpop.xlane.xlu0 %1551
    %1553 = vmax.xlane.f32.xlu0 %v1481
    %v1554 = vpop.xlane.xlu0 %1553
    %1555 = vmax.xlane.f32.xlu0 %v1482
    %v1556 = vpop.xlane.xlu0 %1555
    %1557 = vmax.xlane.f32.xlu0 %v1483
    %v1558 = vpop.xlane.xlu0 %1557
    %1559 = vmax.xlane.f32.xlu0 %v1484
    %v1560 = vpop.xlane.xlu0 %1559
    %1561 = vmax.xlane.f32.xlu0 %v1485
    %v1562 = vpop.xlane.xlu0 %1561
    %1563 = vmax.xlane.f32.xlu0 %v1486
    %v1564 = vpop.xlane.xlu0 %1563
    %1565 = vmax.xlane.f32.xlu0 %v1487
    %v1566 = vpop.xlane.xlu0 %1565
    %1567 = vmax.xlane.f32.xlu0 %v1488
    %v1568 = vpop.xlane.xlu0 %1567
    %1569 = vmax.xlane.f32.xlu0 %v1489
    %v1570 = vpop.xlane.xlu0 %1569
    %1571 = vmax.xlane.f32.xlu0 %v1490
    %v1572 = vpop.xlane.xlu0 %1571
    %1573 = vmax.xlane.f32.xlu0 %v1491
    %v1574 = vpop.xlane.xlu0 %1573
    %1575 = vmax.xlane.f32.xlu0 %v1492
    %v1576 = vpop.xlane.xlu0 %1575
    %1577 = vmax.xlane.f32.xlu0 %v1493
    %v1578 = vpop.xlane.xlu0 %1577
    %1579 = vmax.xlane.f32.xlu0 %v1494
    %v1580 = vpop.xlane.xlu0 %1579
    %1581 = vmax.xlane.f32.xlu0 %v1495
    %v1582 = vpop.xlane.xlu0 %1581
    %1583 = vmax.xlane.f32.xlu0 %v1496
    %v1584 = vpop.xlane.xlu0 %1583
    %1585 = vmax.xlane.f32.xlu0 %v1497
    %v1586 = vpop.xlane.xlu0 %1585
    %1587 = vmax.xlane.f32.xlu0 %v1498
    %v1588 = vpop.xlane.xlu0 %1587
    %1589 = vmax.xlane.f32.xlu0 %v1499
    %v1590 = vpop.xlane.xlu0 %1589
    %1591 = vmax.xlane.f32.xlu0 %v1500
    %v1592 = vpop.xlane.xlu0 %1591
    %1593 = vmax.xlane.f32.xlu0 %v1501
    %v1594 = vpop.xlane.xlu0 %1593
    %1595 = vmax.xlane.f32.xlu0 %v1502
    %v1596 = vpop.xlane.xlu0 %1595
    %1597 = vmax.xlane.f32.xlu0 %v1503
    %v1598 = vpop.xlane.xlu0 %1597
    %1599 = vmax.xlane.f32.xlu0 %v1504
    %v1600 = vpop.xlane.xlu0 %1599
    %1601 = vmax.xlane.f32.xlu0 %v1505
    %v1602 = vpop.xlane.xlu0 %1601
    %1603 = vmax.xlane.f32.xlu0 %v1506
    %v1604 = vpop.xlane.xlu0 %1603
    %1605 = vmax.xlane.f32.xlu0 %v1507
    %v1606 = vpop.xlane.xlu0 %1605
    %1607 = vmax.xlane.f32.xlu0 %v1508
    %v1608 = vpop.xlane.xlu0 %1607
    %1609 = vmax.xlane.f32.xlu0 %v1509
    %v1610 = vpop.xlane.xlu0 %1609
    %1611 = vmax.xlane.f32.xlu0 %v1510
    %v1612 = vpop.xlane.xlu0 %1611
    %1613 = vmax.xlane.f32.xlu0 %v1511
    %v1614 = vpop.xlane.xlu0 %1613
    %1615 = vmax.xlane.f32.xlu0 %v1512
    %v1616 = vpop.xlane.xlu0 %1615
    %1617 = vmax.xlane.f32.xlu0 %v1513
    %v1618 = vpop.xlane.xlu0 %1617
    %1619 = vmax.xlane.f32.xlu0 %v1514
    %v1620 = vpop.xlane.xlu0 %1619
    %1621 = vmax.xlane.f32.xlu0 %v1515
    %v1622 = vpop.xlane.xlu0 %1621
    %1623 = vmax.xlane.f32.xlu0 %v1516
    %v1624 = vpop.xlane.xlu0 %1623
    %1625 = vmax.xlane.f32.xlu0 %v1517
    %v1626 = vpop.xlane.xlu0 %1625
    %1627 = vmax.xlane.f32.xlu0 %v1518
    %v1628 = vpop.xlane.xlu0 %1627
    %1629 = vmax.xlane.f32.xlu0 %v1519
    %v1630 = vpop.xlane.xlu0 %1629
    %1631 = vmax.xlane.f32.xlu0 %v1520
    %v1632 = vpop.xlane.xlu0 %1631
    %1633 = vmax.xlane.f32.xlu0 %v1521
    %v1634 = vpop.xlane.xlu0 %1633
    %1635 = vmax.xlane.f32.xlu0 %v1522
    %v1636 = vpop.xlane.xlu0 %1635
    %1637 = vmax.xlane.f32.xlu0 %v1523
    %v1638 = vpop.xlane.xlu0 %1637
    %1639 = vmax.xlane.f32.xlu0 %v1524
    %v1640 = vpop.xlane.xlu0 %1639
    %1641 = vmax.xlane.f32.xlu0 %v1525
    %v1642 = vpop.xlane.xlu0 %1641
    %1643 = vmax.xlane.f32.xlu0 %v1526
    %v1644 = vpop.xlane.xlu0 %1643
    %1645 = vmax.xlane.f32.xlu0 %v1527
    %v1646 = vpop.xlane.xlu0 %1645
    %1647 = vmax.xlane.f32.xlu0 %v1528
    %v1648 = vpop.xlane.xlu0 %1647
    %1649 = vmax.xlane.f32.xlu0 %v1529
    %v1650 = vpop.xlane.xlu0 %1649
    %1651 = vmax.xlane.f32.xlu0 %v1530
    %v1652 = vpop.xlane.xlu0 %1651
    %1653 = vmax.xlane.f32.xlu0 %v1531
    %v1654 = vpop.xlane.xlu0 %1653
    %1655 = vmax.xlane.f32.xlu0 %v1532
    %v1656 = vpop.xlane.xlu0 %1655
    %1657 = vmax.xlane.f32.xlu0 %v1533
    %v1658 = vpop.xlane.xlu0 %1657
    %1659 = vmax.xlane.f32.xlu0 %v1534
    %v1660 = vpop.xlane.xlu0 %1659
    %1661 = vmax.xlane.f32.xlu0 %v1535
    %v1662 = vpop.xlane.xlu0 %1661
    %1663 = vmax.xlane.f32.xlu0 %v1536
    %v1664 = vpop.xlane.xlu0 %1663
    %v1665 = vsub.f32 %v1473, %v1538
    %v1666 = vsub.f32 %v1474, %v1540
    %v1667 = vsub.f32 %v1475, %v1542
    %v1668 = vsub.f32 %v1476, %v1544
    %v1669 = vsub.f32 %v1477, %v1546
    %v1670 = vsub.f32 %v1478, %v1548
    %v1671 = vsub.f32 %v1479, %v1550
    %v1672 = vsub.f32 %v1480, %v1552
    %v1673 = vsub.f32 %v1481, %v1554
    %v1674 = vsub.f32 %v1482, %v1556
    %v1675 = vsub.f32 %v1483, %v1558
    %v1676 = vsub.f32 %v1484, %v1560
    %v1677 = vsub.f32 %v1485, %v1562
    %v1678 = vsub.f32 %v1486, %v1564
    %v1679 = vsub.f32 %v1487, %v1566
    %v1680 = vsub.f32 %v1488, %v1568
    %v1681 = vsub.f32 %v1489, %v1570
    %v1682 = vsub.f32 %v1490, %v1572
    %v1683 = vsub.f32 %v1491, %v1574
    %v1684 = vsub.f32 %v1492, %v1576
    %v1685 = vsub.f32 %v1493, %v1578
    %v1686 = vsub.f32 %v1494, %v1580
    %v1687 = vsub.f32 %v1495, %v1582
    %v1688 = vsub.f32 %v1496, %v1584
    %v1689 = vsub.f32 %v1497, %v1586
    %v1690 = vsub.f32 %v1498, %v1588
    %v1691 = vsub.f32 %v1499, %v1590
    %v1692 = vsub.f32 %v1500, %v1592
    %v1693 = vsub.f32 %v1501, %v1594
    %v1694 = vsub.f32 %v1502, %v1596
    %v1695 = vsub.f32 %v1503, %v1598
    %v1696 = vsub.f32 %v1504, %v1600
    %v1697 = vsub.f32 %v1505, %v1602
    %v1698 = vsub.f32 %v1506, %v1604
    %v1699 = vsub.f32 %v1507, %v1606
    %v1700 = vsub.f32 %v1508, %v1608
    %v1701 = vsub.f32 %v1509, %v1610
    %v1702 = vsub.f32 %v1510, %v1612
    %v1703 = vsub.f32 %v1511, %v1614
    %v1704 = vsub.f32 %v1512, %v1616
    %v1705 = vsub.f32 %v1513, %v1618
    %v1706 = vsub.f32 %v1514, %v1620
    %v1707 = vsub.f32 %v1515, %v1622
    %v1708 = vsub.f32 %v1516, %v1624
    %v1709 = vsub.f32 %v1517, %v1626
    %v1710 = vsub.f32 %v1518, %v1628
    %v1711 = vsub.f32 %v1519, %v1630
    %v1712 = vsub.f32 %v1520, %v1632
    %v1713 = vsub.f32 %v1521, %v1634
    %v1714 = vsub.f32 %v1522, %v1636
    %v1715 = vsub.f32 %v1523, %v1638
    %v1716 = vsub.f32 %v1524, %v1640
    %v1717 = vsub.f32 %v1525, %v1642
    %v1718 = vsub.f32 %v1526, %v1644
    %v1719 = vsub.f32 %v1527, %v1646
    %v1720 = vsub.f32 %v1528, %v1648
    %v1721 = vsub.f32 %v1529, %v1650
    %v1722 = vsub.f32 %v1530, %v1652
    %v1723 = vsub.f32 %v1531, %v1654
    %v1724 = vsub.f32 %v1532, %v1656
    %v1725 = vsub.f32 %v1533, %v1658
    %v1726 = vsub.f32 %v1534, %v1660
    %v1727 = vsub.f32 %v1535, %v1662
    %v1728 = vsub.f32 %v1536, %v1664
    %v1729 = vmul.f32 %v1665, 1.442695
    %v1730 = vpow.pop %v1729
    %v1731 = vmul.f32 %v1666, 1.442695
    %v1732 = vpow.pop %v1731
    %v1733 = vmul.f32 %v1667, 1.442695
    %v1734 = vpow.pop %v1733
    %v1735 = vmul.f32 %v1668, 1.442695
    %v1736 = vpow.pop %v1735
    %v1737 = vmul.f32 %v1669, 1.442695
    %v1738 = vpow.pop %v1737
    %v1739 = vmul.f32 %v1670, 1.442695
    %v1740 = vpow.pop %v1739
    %v1741 = vmul.f32 %v1671, 1.442695
    %v1742 = vpow.pop %v1741
    %v1743 = vmul.f32 %v1672, 1.442695
    %v1744 = vpow.pop %v1743
    %v1745 = vmul.f32 %v1673, 1.442695
    %v1746 = vpow.pop %v1745
    %v1747 = vmul.f32 %v1674, 1.442695
    %v1748 = vpow.pop %v1747
    %v1749 = vmul.f32 %v1675, 1.442695
    %v1750 = vpow.pop %v1749
    %v1751 = vmul.f32 %v1676, 1.442695
    %v1752 = vpow.pop %v1751
    %v1753 = vmul.f32 %v1677, 1.442695
    %v1754 = vpow.pop %v1753
    %v1755 = vmul.f32 %v1678, 1.442695
    %v1756 = vpow.pop %v1755
    %v1757 = vmul.f32 %v1679, 1.442695
    %v1758 = vpow.pop %v1757
    %v1759 = vmul.f32 %v1680, 1.442695
    %v1760 = vpow.pop %v1759
    %v1761 = vmul.f32 %v1681, 1.442695
    %v1762 = vpow.pop %v1761
    %v1763 = vmul.f32 %v1682, 1.442695
    %v1764 = vpow.pop %v1763
    %v1765 = vmul.f32 %v1683, 1.442695
    %v1766 = vpow.pop %v1765
    %v1767 = vmul.f32 %v1684, 1.442695
    %v1768 = vpow.pop %v1767
    %v1769 = vmul.f32 %v1685, 1.442695
    %v1770 = vpow.pop %v1769
    %v1771 = vmul.f32 %v1686, 1.442695
    %v1772 = vpow.pop %v1771
    %v1773 = vmul.f32 %v1687, 1.442695
    %v1774 = vpow.pop %v1773
    %v1775 = vmul.f32 %v1688, 1.442695
    %v1776 = vpow.pop %v1775
    %v1777 = vmul.f32 %v1689, 1.442695
    %v1778 = vpow.pop %v1777
    %v1779 = vmul.f32 %v1690, 1.442695
    %v1780 = vpow.pop %v1779
    %v1781 = vmul.f32 %v1691, 1.442695
    %v1782 = vpow.pop %v1781
    %v1783 = vmul.f32 %v1692, 1.442695
    %v1784 = vpow.pop %v1783
    %v1785 = vmul.f32 %v1693, 1.442695
    %v1786 = vpow.pop %v1785
    %v1787 = vmul.f32 %v1694, 1.442695
    %v1788 = vpow.pop %v1787
    %v1789 = vmul.f32 %v1695, 1.442695
    %v1790 = vpow.pop %v1789
    %v1791 = vmul.f32 %v1696, 1.442695
    %v1792 = vpow.pop %v1791
    %v1793 = vmul.f32 %v1697, 1.442695
    %v1794 = vpow.pop %v1793
    %v1795 = vmul.f32 %v1698, 1.442695
    %v1796 = vpow.pop %v1795
    %v1797 = vmul.f32 %v1699, 1.442695
    %v1798 = vpow.pop %v1797
    %v1799 = vmul.f32 %v1700, 1.442695
    %v1800 = vpow.pop %v1799
    %v1801 = vmul.f32 %v1701, 1.442695
    %v1802 = vpow.pop %v1801
    %v1803 = vmul.f32 %v1702, 1.442695
    %v1804 = vpow.pop %v1803
    %v1805 = vmul.f32 %v1703, 1.442695
    %v1806 = vpow.pop %v1805
    %v1807 = vmul.f32 %v1704, 1.442695
    %v1808 = vpow.pop %v1807
    %v1809 = vmul.f32 %v1705, 1.442695
    %v1810 = vpow.pop %v1809
    %v1811 = vmul.f32 %v1706, 1.442695
    %v1812 = vpow.pop %v1811
    %v1813 = vmul.f32 %v1707, 1.442695
    %v1814 = vpow.pop %v1813
    %v1815 = vmul.f32 %v1708, 1.442695
    %v1816 = vpow.pop %v1815
    %v1817 = vmul.f32 %v1709, 1.442695
    %v1818 = vpow.pop %v1817
    %v1819 = vmul.f32 %v1710, 1.442695
    %v1820 = vpow.pop %v1819
    %v1821 = vmul.f32 %v1711, 1.442695
    %v1822 = vpow.pop %v1821
    %v1823 = vmul.f32 %v1712, 1.442695
    %v1824 = vpow.pop %v1823
    %v1825 = vmul.f32 %v1713, 1.442695
    %v1826 = vpow.pop %v1825
    %v1827 = vmul.f32 %v1714, 1.442695
    %v1828 = vpow.pop %v1827
    %v1829 = vmul.f32 %v1715, 1.442695
    %v1830 = vpow.pop %v1829
    %v1831 = vmul.f32 %v1716, 1.442695
    %v1832 = vpow.pop %v1831
    %v1833 = vmul.f32 %v1717, 1.442695
    %v1834 = vpow.pop %v1833
    %v1835 = vmul.f32 %v1718, 1.442695
    %v1836 = vpow.pop %v1835
    %v1837 = vmul.f32 %v1719, 1.442695
    %v1838 = vpow.pop %v1837
    %v1839 = vmul.f32 %v1720, 1.442695
    %v1840 = vpow.pop %v1839
    %v1841 = vmul.f32 %v1721, 1.442695
    %v1842 = vpow.pop %v1841
    %v1843 = vmul.f32 %v1722, 1.442695
    %v1844 = vpow.pop %v1843
    %v1845 = vmul.f32 %v1723, 1.442695
    %v1846 = vpow.pop %v1845
    %v1847 = vmul.f32 %v1724, 1.442695
    %v1848 = vpow.pop %v1847
    %v1849 = vmul.f32 %v1725, 1.442695
    %v1850 = vpow.pop %v1849
    %v1851 = vmul.f32 %v1726, 1.442695
    %v1852 = vpow.pop %v1851
    %v1853 = vmul.f32 %v1727, 1.442695
    %v1854 = vpow.pop %v1853
    %v1855 = vmul.f32 %v1728, 1.442695
    %v1856 = vpow.pop %v1855
    %1857 = vadd.xlane.f32.xlu0 %v1730
    %v1858 = vpop.xlane.xlu0 %1857
    %1859 = vadd.xlane.f32.xlu0 %v1732
    %v1860 = vpop.xlane.xlu0 %1859
    %1861 = vadd.xlane.f32.xlu0 %v1734
    %v1862 = vpop.xlane.xlu0 %1861
    %1863 = vadd.xlane.f32.xlu0 %v1736
    %v1864 = vpop.xlane.xlu0 %1863
    %1865 = vadd.xlane.f32.xlu0 %v1738
    %v1866 = vpop.xlane.xlu0 %1865
    %1867 = vadd.xlane.f32.xlu0 %v1740
    %v1868 = vpop.xlane.xlu0 %1867
    %1869 = vadd.xlane.f32.xlu0 %v1742
    %v1870 = vpop.xlane.xlu0 %1869
    %1871 = vadd.xlane.f32.xlu0 %v1744
    %v1872 = vpop.xlane.xlu0 %1871
    %1873 = vadd.xlane.f32.xlu0 %v1746
    %v1874 = vpop.xlane.xlu0 %1873
    %1875 = vadd.xlane.f32.xlu0 %v1748
    %v1876 = vpop.xlane.xlu0 %1875
    %1877 = vadd.xlane.f32.xlu0 %v1750
    %v1878 = vpop.xlane.xlu0 %1877
    %1879 = vadd.xlane.f32.xlu0 %v1752
    %v1880 = vpop.xlane.xlu0 %1879
    %1881 = vadd.xlane.f32.xlu0 %v1754
    %v1882 = vpop.xlane.xlu0 %1881
    %1883 = vadd.xlane.f32.xlu0 %v1756
    %v1884 = vpop.xlane.xlu0 %1883
    %1885 = vadd.xlane.f32.xlu0 %v1758
    %v1886 = vpop.xlane.xlu0 %1885
    %1887 = vadd.xlane.f32.xlu0 %v1760
    %v1888 = vpop.xlane.xlu0 %1887
    %1889 = vadd.xlane.f32.xlu0 %v1762
    %v1890 = vpop.xlane.xlu0 %1889
    %1891 = vadd.xlane.f32.xlu0 %v1764
    %v1892 = vpop.xlane.xlu0 %1891
    %1893 = vadd.xlane.f32.xlu0 %v1766
    %v1894 = vpop.xlane.xlu0 %1893
    %1895 = vadd.xlane.f32.xlu0 %v1768
    %v1896 = vpop.xlane.xlu0 %1895
    %1897 = vadd.xlane.f32.xlu0 %v1770
    %v1898 = vpop.xlane.xlu0 %1897
    %1899 = vadd.xlane.f32.xlu0 %v1772
    %v1900 = vpop.xlane.xlu0 %1899
    %1901 = vadd.xlane.f32.xlu0 %v1774
    %v1902 = vpop.xlane.xlu0 %1901
    %1903 = vadd.xlane.f32.xlu0 %v1776
    %v1904 = vpop.xlane.xlu0 %1903
    %1905 = vadd.xlane.f32.xlu0 %v1778
    %v1906 = vpop.xlane.xlu0 %1905
    %1907 = vadd.xlane.f32.xlu0 %v1780
    %v1908 = vpop.xlane.xlu0 %1907
    %1909 = vadd.xlane.f32.xlu0 %v1782
    %v1910 = vpop.xlane.xlu0 %1909
    %1911 = vadd.xlane.f32.xlu0 %v1784
    %v1912 = vpop.xlane.xlu0 %1911
    %1913 = vadd.xlane.f32.xlu0 %v1786
    %v1914 = vpop.xlane.xlu0 %1913
    %1915 = vadd.xlane.f32.xlu0 %v1788
    %v1916 = vpop.xlane.xlu0 %1915
    %1917 = vadd.xlane.f32.xlu0 %v1790
    %v1918 = vpop.xlane.xlu0 %1917
    %1919 = vadd.xlane.f32.xlu0 %v1792
    %v1920 = vpop.xlane.xlu0 %1919
    %1921 = vadd.xlane.f32.xlu0 %v1794
    %v1922 = vpop.xlane.xlu0 %1921
    %1923 = vadd.xlane.f32.xlu0 %v1796
    %v1924 = vpop.xlane.xlu0 %1923
    %1925 = vadd.xlane.f32.xlu0 %v1798
    %v1926 = vpop.xlane.xlu0 %1925
    %1927 = vadd.xlane.f32.xlu0 %v1800
    %v1928 = vpop.xlane.xlu0 %1927
    %1929 = vadd.xlane.f32.xlu0 %v1802
    %v1930 = vpop.xlane.xlu0 %1929
    %1931 = vadd.xlane.f32.xlu0 %v1804
    %v1932 = vpop.xlane.xlu0 %1931
    %1933 = vadd.xlane.f32.xlu0 %v1806
    %v1934 = vpop.xlane.xlu0 %1933
    %1935 = vadd.xlane.f32.xlu0 %v1808
    %v1936 = vpop.xlane.xlu0 %1935
    %1937 = vadd.xlane.f32.xlu0 %v1810
    %v1938 = vpop.xlane.xlu0 %1937
    %1939 = vadd.xlane.f32.xlu0 %v1812
    %v1940 = vpop.xlane.xlu0 %1939
    %1941 = vadd.xlane.f32.xlu0 %v1814
    %v1942 = vpop.xlane.xlu0 %1941
    %1943 = vadd.xlane.f32.xlu0 %v1816
    %v1944 = vpop.xlane.xlu0 %1943
    %1945 = vadd.xlane.f32.xlu0 %v1818
    %v1946 = vpop.xlane.xlu0 %1945
    %1947 = vadd.xlane.f32.xlu0 %v1820
    %v1948 = vpop.xlane.xlu0 %1947
    %1949 = vadd.xlane.f32.xlu0 %v1822
    %v1950 = vpop.xlane.xlu0 %1949
    %1951 = vadd.xlane.f32.xlu0 %v1824
    %v1952 = vpop.xlane.xlu0 %1951
    %1953 = vadd.xlane.f32.xlu0 %v1826
    %v1954 = vpop.xlane.xlu0 %1953
    %1955 = vadd.xlane.f32.xlu0 %v1828
    %v1956 = vpop.xlane.xlu0 %1955
    %1957 = vadd.xlane.f32.xlu0 %v1830
    %v1958 = vpop.xlane.xlu0 %1957
    %1959 = vadd.xlane.f32.xlu0 %v1832
    %v1960 = vpop.xlane.xlu0 %1959
    %1961 = vadd.xlane.f32.xlu0 %v1834
    %v1962 = vpop.xlane.xlu0 %1961
    %1963 = vadd.xlane.f32.xlu0 %v1836
    %v1964 = vpop.xlane.xlu0 %1963
    %1965 = vadd.xlane.f32.xlu0 %v1838
    %v1966 = vpop.xlane.xlu0 %1965
    %1967 = vadd.xlane.f32.xlu0 %v1840
    %v1968 = vpop.xlane.xlu0 %1967
    %1969 = vadd.xlane.f32.xlu0 %v1842
    %v1970 = vpop.xlane.xlu0 %1969
    %1971 = vadd.xlane.f32.xlu0 %v1844
    %v1972 = vpop.xlane.xlu0 %1971
    %1973 = vadd.xlane.f32.xlu0 %v1846
    %v1974 = vpop.xlane.xlu0 %1973
    %1975 = vadd.xlane.f32.xlu0 %v1848
    %v1976 = vpop.xlane.xlu0 %1975
    %1977 = vadd.xlane.f32.xlu0 %v1850
    %v1978 = vpop.xlane.xlu0 %1977
    %1979 = vadd.xlane.f32.xlu0 %v1852
    %v1980 = vpop.xlane.xlu0 %1979
    %1981 = vadd.xlane.f32.xlu0 %v1854
    %v1982 = vpop.xlane.xlu0 %1981
    %1983 = vadd.xlane.f32.xlu0 %v1856
    %v1984 = vpop.xlane.xlu0 %1983
    %v1985 = vrcp.pop %v1858
    %v1986 = vrcp.pop %v1860
    %v1987 = vrcp.pop %v1862
    %v1988 = vrcp.pop %v1864
    %v1989 = vrcp.pop %v1866
    %v1990 = vrcp.pop %v1868
    %v1991 = vrcp.pop %v1870
    %v1992 = vrcp.pop %v1872
    %v1993 = vrcp.pop %v1874
    %v1994 = vrcp.pop %v1876
    %v1995 = vrcp.pop %v1878
    %v1996 = vrcp.pop %v1880
    %v1997 = vrcp.pop %v1882
    %v1998 = vrcp.pop %v1884
    %v1999 = vrcp.pop %v1886
    %v2000 = vrcp.pop %v1888
    %v2001 = vrcp.pop %v1890
    %v2002 = vrcp.pop %v1892
    %v2003 = vrcp.pop %v1894
    %v2004 = vrcp.pop %v1896
    %v2005 = vrcp.pop %v1898
    %v2006 = vrcp.pop %v1900
    %v2007 = vrcp.pop %v1902
    %v2008 = vrcp.pop %v1904
    %v2009 = vrcp.pop %v1906
    %v2010 = vrcp.pop %v1908
    %v2011 = vrcp.pop %v1910
    %v2012 = vrcp.pop %v1912
    %v2013 = vrcp.pop %v1914
    %v2014 = vrcp.pop %v1916
    %v2015 = vrcp.pop %v1918
    %v2016 = vrcp.pop %v1920
    %v2017 = vrcp.pop %v1922
    %v2018 = vrcp.pop %v1924
    %v2019 = vrcp.pop %v1926
    %v2020 = vrcp.pop %v1928
    %v2021 = vrcp.pop %v1930
    %v2022 = vrcp.pop %v1932
    %v2023 = vrcp.pop %v1934
    %v2024 = vrcp.pop %v1936
    %v2025 = vrcp.pop %v1938
    %v2026 = vrcp.pop %v1940
    %v2027 = vrcp.pop %v1942
    %v2028 = vrcp.pop %v1944
    %v2029 = vrcp.pop %v1946
    %v2030 = vrcp.pop %v1948
    %v2031 = vrcp.pop %v1950
    %v2032 = vrcp.pop %v1952
    %v2033 = vrcp.pop %v1954
    %v2034 = vrcp.pop %v1956
    %v2035 = vrcp.pop %v1958
    %v2036 = vrcp.pop %v1960
    %v2037 = vrcp.pop %v1962
    %v2038 = vrcp.pop %v1964
    %v2039 = vrcp.pop %v1966
    %v2040 = vrcp.pop %v1968
    %v2041 = vrcp.pop %v1970
    %v2042 = vrcp.pop %v1972
    %v2043 = vrcp.pop %v1974
    %v2044 = vrcp.pop %v1976
    %v2045 = vrcp.pop %v1978
    %v2046 = vrcp.pop %v1980
    %v2047 = vrcp.pop %v1982
    %v2048 = vrcp.pop %v1984
    %v2049 = vmul.f32 %v1730, %v1985
    %v2050 = vmul.f32 %v1732, %v1986
    %v2051 = vmul.f32 %v1734, %v1987
    %v2052 = vmul.f32 %v1736, %v1988
    %v2053 = vmul.f32 %v1738, %v1989
    %v2054 = vmul.f32 %v1740, %v1990
    %v2055 = vmul.f32 %v1742, %v1991
    %v2056 = vmul.f32 %v1744, %v1992
    %v2057 = vmul.f32 %v1746, %v1993
    %v2058 = vmul.f32 %v1748, %v1994
    %v2059 = vmul.f32 %v1750, %v1995
    %v2060 = vmul.f32 %v1752, %v1996
    %v2061 = vmul.f32 %v1754, %v1997
    %v2062 = vmul.f32 %v1756, %v1998
    %v2063 = vmul.f32 %v1758, %v1999
    %v2064 = vmul.f32 %v1760, %v2000
    %v2065 = vmul.f32 %v1762, %v2001
    %v2066 = vmul.f32 %v1764, %v2002
    %v2067 = vmul.f32 %v1766, %v2003
    %v2068 = vmul.f32 %v1768, %v2004
    %v2069 = vmul.f32 %v1770, %v2005
    %v2070 = vmul.f32 %v1772, %v2006
    %v2071 = vmul.f32 %v1774, %v2007
    %v2072 = vmul.f32 %v1776, %v2008
    %v2073 = vmul.f32 %v1778, %v2009
    %v2074 = vmul.f32 %v1780, %v2010
    %v2075 = vmul.f32 %v1782, %v2011
    %v2076 = vmul.f32 %v1784, %v2012
    %v2077 = vmul.f32 %v1786, %v2013
    %v2078 = vmul.f32 %v1788, %v2014
    %v2079 = vmul.f32 %v1790, %v2015
    %v2080 = vmul.f32 %v1792, %v2016
    %v2081 = vmul.f32 %v1794, %v2017
    %v2082 = vmul.f32 %v1796, %v2018
    %v2083 = vmul.f32 %v1798, %v2019
    %v2084 = vmul.f32 %v1800, %v2020
    %v2085 = vmul.f32 %v1802, %v2021
    %v2086 = vmul.f32 %v1804, %v2022
    %v2087 = vmul.f32 %v1806, %v2023
    %v2088 = vmul.f32 %v1808, %v2024
    %v2089 = vmul.f32 %v1810, %v2025
    %v2090 = vmul.f32 %v1812, %v2026
    %v2091 = vmul.f32 %v1814, %v2027
    %v2092 = vmul.f32 %v1816, %v2028
    %v2093 = vmul.f32 %v1818, %v2029
    %v2094 = vmul.f32 %v1820, %v2030
    %v2095 = vmul.f32 %v1822, %v2031
    %v2096 = vmul.f32 %v1824, %v2032
    %v2097 = vmul.f32 %v1826, %v2033
    %v2098 = vmul.f32 %v1828, %v2034
    %v2099 = vmul.f32 %v1830, %v2035
    %v2100 = vmul.f32 %v1832, %v2036
    %v2101 = vmul.f32 %v1834, %v2037
    %v2102 = vmul.f32 %v1836, %v2038
    %v2103 = vmul.f32 %v1838, %v2039
    %v2104 = vmul.f32 %v1840, %v2040
    %v2105 = vmul.f32 %v1842, %v2041
    %v2106 = vmul.f32 %v1844, %v2042
    %v2107 = vmul.f32 %v1846, %v2043
    %v2108 = vmul.f32 %v1848, %v2044
    %v2109 = vmul.f32 %v1850, %v2045
    %v2110 = vmul.f32 %v1852, %v2046
    %v2111 = vmul.f32 %v1854, %v2047
    %v2112 = vmul.f32 %v1856, %v2048
    %v2113 = vpack.c.bf16 %v2050, %v2049
    %v2114 = vpack.c.bf16 %v2052, %v2051
    %v2115 = vpack.c.bf16 %v2054, %v2053
    %v2116 = vpack.c.bf16 %v2056, %v2055
    %v2117 = vpack.c.bf16 %v2058, %v2057
    %v2118 = vpack.c.bf16 %v2060, %v2059
    %v2119 = vpack.c.bf16 %v2062, %v2061
    %v2120 = vpack.c.bf16 %v2064, %v2063
    %v2121 = vpack.c.bf16 %v2066, %v2065
    %v2122 = vpack.c.bf16 %v2068, %v2067
    %v2123 = vpack.c.bf16 %v2070, %v2069
    %v2124 = vpack.c.bf16 %v2072, %v2071
    %v2125 = vpack.c.bf16 %v2074, %v2073
    %v2126 = vpack.c.bf16 %v2076, %v2075
    %v2127 = vpack.c.bf16 %v2078, %v2077
    %v2128 = vpack.c.bf16 %v2080, %v2079
    %v2129 = vpack.c.bf16 %v2082, %v2081
    %v2130 = vpack.c.bf16 %v2084, %v2083
    %v2131 = vpack.c.bf16 %v2086, %v2085
    %v2132 = vpack.c.bf16 %v2088, %v2087
    %v2133 = vpack.c.bf16 %v2090, %v2089
    %v2134 = vpack.c.bf16 %v2092, %v2091
    %v2135 = vpack.c.bf16 %v2094, %v2093
    %v2136 = vpack.c.bf16 %v2096, %v2095
    %v2137 = vpack.c.bf16 %v2098, %v2097
    %v2138 = vpack.c.bf16 %v2100, %v2099
    %v2139 = vpack.c.bf16 %v2102, %v2101
    %v2140 = vpack.c.bf16 %v2104, %v2103
    %v2141 = vpack.c.bf16 %v2106, %v2105
    %v2142 = vpack.c.bf16 %v2108, %v2107
    %v2143 = vpack.c.bf16 %v2110, %v2109
    %v2144 = vpack.c.bf16 %v2112, %v2111
    %2145 = vmatprep.subr.bf16.mxu0 0
    %2146 = vmatpush1.bf16.xpose.msra.mxu0 %v2113
    %2147 = vmatprep.subr.bf16.mxu0 0
    %2148 = vmatpush1.bf16.xpose.msra.mxu0 %v2114
    %2149 = vmatprep.subr.bf16.mxu0 0
    %2150 = vmatpush1.bf16.xpose.msra.mxu0 %v2115
    %2151 = vmatprep.subr.bf16.mxu0 0
    %2152 = vmatpush1.bf16.xpose.msra.mxu0 %v2116
    %2153 = vmatprep.subr.bf16.mxu0 0
    %2154 = vmatpush1.bf16.xpose.msra.mxu0 %v2117
    %2155 = vmatprep.subr.bf16.mxu0 0
    %2156 = vmatpush1.bf16.xpose.msra.mxu0 %v2118
    %2157 = vmatprep.subr.bf16.mxu0 0
    %2158 = vmatpush1.bf16.xpose.msra.mxu0 %v2119
    %2159 = vmatprep.subr.bf16.mxu0 0
    %2160 = vmatpush1.bf16.xpose.msra.mxu0 %v2120
    %2161 = vmatprep.subr.bf16.mxu0 0
    %2162 = vmatpush1.bf16.xpose.msra.mxu0 0
    %2163 = vmatprep.subr.bf16.mxu0 0
    %2164 = vmatpush1.bf16.xpose.msra.mxu0 0
    %2165 = vmatprep.subr.bf16.mxu0 0
    %2166 = vmatpush1.bf16.xpose.msra.mxu0 0
    %2167 = vmatprep.subr.bf16.mxu0 0
    %2168 = vmatpush1.bf16.xpose.msra.mxu0 0
    %2169 = vmatprep.subr.bf16.mxu0 0
    %2170 = vmatpush1.bf16.xpose.msra.mxu0 0
    %2171 = vmatprep.subr.bf16.mxu0 0
    %2172 = vmatpush1.bf16.xpose.msra.mxu0 0
    %2173 = vmatprep.subr.bf16.mxu0 0
    %2174 = vmatpush1.bf16.xpose.msra.mxu0 0
    %2175 = vmatprep.subr.bf16.mxu0 0
    %2176 = vmatpush1.bf16.xpose.msra.mxu0 0
    %2177 = vmatprep.mubr.bf16.mxu0 0
    %2178 = vmatmul.mubr.bf16.gmra.mrb[0].mxu0 %v771
    %v2179 = vpop.f32.mrb[0].mxu0
    %v2180 = vadd.f32 0.0, %v2179
    %v2181 = vpop.f32.mrb[0].mxu0
    %v2182 = vpop.f32.mrb[0].mxu0
    %v2183 = vpop.f32.mrb[0].mxu0
    %2184 = vdwg.mxu0
    %v2186 = vrot.slane %v771, 4
    %2188 = vmatprep.subr.bf16.mxu0 0
    %2189 = vmatpush1.bf16.xpose.msra.mxu0 %v2121
    %2190 = vmatprep.subr.bf16.mxu0 0
    %2191 = vmatpush1.bf16.xpose.msra.mxu0 %v2122
    %2192 = vmatprep.subr.bf16.mxu0 0
    %2193 = vmatpush1.bf16.xpose.msra.mxu0 %v2123
    %2194 = vmatprep.subr.bf16.mxu0 0
    %2195 = vmatpush1.bf16.xpose.msra.mxu0 %v2124
    %2196 = vmatprep.subr.bf16.mxu0 0
    %2197 = vmatpush1.bf16.xpose.msra.mxu0 %v2125
    %2198 = vmatprep.subr.bf16.mxu0 0
    %2199 = vmatpush1.bf16.xpose.msra.mxu0 %v2126
    %2200 = vmatprep.subr.bf16.mxu0 0
    %2201 = vmatpush1.bf16.xpose.msra.mxu0 %v2127
    %2202 = vmatprep.subr.bf16.mxu0 0
    %2203 = vmatpush1.bf16.xpose.msra.mxu0 %v2128
    %2204 = vmatprep.subr.bf16.mxu0 0
    %2205 = vmatpush1.bf16.xpose.msra.mxu0 0
    %2206 = vmatprep.subr.bf16.mxu0 0
    %2207 = vmatpush1.bf16.xpose.msra.mxu0 0
    %2208 = vmatprep.subr.bf16.mxu0 0
    %2209 = vmatpush1.bf16.xpose.msra.mxu0 0
    %2210 = vmatprep.subr.bf16.mxu0 0
    %2211 = vmatpush1.bf16.xpose.msra.mxu0 0
    %2212 = vmatprep.subr.bf16.mxu0 0
    %2213 = vmatpush1.bf16.xpose.msra.mxu0 0
    %2214 = vmatprep.subr.bf16.mxu0 0
    %2215 = vmatpush1.bf16.xpose.msra.mxu0 0
    %2216 = vmatprep.subr.bf16.mxu0 0
    %2217 = vmatpush1.bf16.xpose.msra.mxu0 0
    %2218 = vmatprep.subr.bf16.mxu0 0
    %2219 = vmatpush1.bf16.xpose.msra.mxu0 0
    %2220 = vmatprep.mubr.bf16.mxu0 0
    %2221 = vmatmul.mubr.bf16.gmra.mrb[0].mxu0 %v2186
    %v2222 = vpop.f32.mrb[0].mxu0
    %v2223 = vadd.f32 0.0, %v2222
    %v2224 = vpop.f32.mrb[0].mxu0
    %v2225 = vpop.f32.mrb[0].mxu0
    %v2226 = vpop.f32.mrb[0].mxu0
    %2227 = vdwg.mxu0
    %2228 = vmatprep.subr.bf16.mxu0 0
    %2229 = vmatpush1.bf16.xpose.msra.mxu0 %v2129
    %2230 = vmatprep.subr.bf16.mxu0 0
    %2231 = vmatpush1.bf16.xpose.msra.mxu0 %v2130
    %2232 = vmatprep.subr.bf16.mxu0 0
    %2233 = vmatpush1.bf16.xpose.msra.mxu0 %v2131
    %2234 = vmatprep.subr.bf16.mxu0 0
    %2235 = vmatpush1.bf16.xpose.msra.mxu0 %v2132
    %2236 = vmatprep.subr.bf16.mxu0 0
    %2237 = vmatpush1.bf16.xpose.msra.mxu0 %v2133
    %2238 = vmatprep.subr.bf16.mxu0 0
    %2239 = vmatpush1.bf16.xpose.msra.mxu0 %v2134
    %2240 = vmatprep.subr.bf16.mxu0 0
    %2241 = vmatpush1.bf16.xpose.msra.mxu0 %v2135
    %2242 = vmatprep.subr.bf16.mxu0 0
    %2243 = vmatpush1.bf16.xpose.msra.mxu0 %v2136
    %2244 = vmatprep.subr.bf16.mxu0 0
    %2245 = vmatpush1.bf16.xpose.msra.mxu0 0
    %2246 = vmatprep.subr.bf16.mxu0 0
    %2247 = vmatpush1.bf16.xpose.msra.mxu0 0
    %2248 = vmatprep.subr.bf16.mxu0 0
    %2249 = vmatpush1.bf16.xpose.msra.mxu0 0
    %2250 = vmatprep.subr.bf16.mxu0 0
    %2251 = vmatpush1.bf16.xpose.msra.mxu0 0
    %2252 = vmatprep.subr.bf16.mxu0 0
    %2253 = vmatpush1.bf16.xpose.msra.mxu0 0
    %2254 = vmatprep.subr.bf16.mxu0 0
    %2255 = vmatpush1.bf16.xpose.msra.mxu0 0
    %2256 = vmatprep.subr.bf16.mxu0 0
    %2257 = vmatpush1.bf16.xpose.msra.mxu0 0
    %2258 = vmatprep.subr.bf16.mxu0 0
    %2259 = vmatpush1.bf16.xpose.msra.mxu0 0
    %2260 = vmatprep.mubr.bf16.mxu0 0
    %2261 = vmatmul.mubr.bf16.gmra.mrb[0].mxu0 %v772
    %v2262 = vpop.f32.mrb[0].mxu0
    %v2263 = vadd.f32 0.0, %v2262
    %v2264 = vpop.f32.mrb[0].mxu0
    %v2265 = vpop.f32.mrb[0].mxu0
    %v2266 = vpop.f32.mrb[0].mxu0
    %2267 = vdwg.mxu0
    %v2269 = vrot.slane %v772, 4
    %2271 = vmatprep.subr.bf16.mxu0 0
    %2272 = vmatpush1.bf16.xpose.msra.mxu0 %v2137
    %2273 = vmatprep.subr.bf16.mxu0 0
    %2274 = vmatpush1.bf16.xpose.msra.mxu0 %v2138
    %2275 = vmatprep.subr.bf16.mxu0 0
    %2276 = vmatpush1.bf16.xpose.msra.mxu0 %v2139
    %2277 = vmatprep.subr.bf16.mxu0 0
    %2278 = vmatpush1.bf16.xpose.msra.mxu0 %v2140
    %2279 = vmatprep.subr.bf16.mxu0 0
    %2280 = vmatpush1.bf16.xpose.msra.mxu0 %v2141
    %2281 = vmatprep.subr.bf16.mxu0 0
    %2282 = vmatpush1.bf16.xpose.msra.mxu0 %v2142
    %2283 = vmatprep.subr.bf16.mxu0 0
    %2284 = vmatpush1.bf16.xpose.msra.mxu0 %v2143
    %2285 = vmatprep.subr.bf16.mxu0 0
    %2286 = vmatpush1.bf16.xpose.msra.mxu0 %v2144
    %2287 = vmatprep.subr.bf16.mxu0 0
    %2288 = vmatpush1.bf16.xpose.msra.mxu0 0
    %2289 = vmatprep.subr.bf16.mxu0 0
    %2290 = vmatpush1.bf16.xpose.msra.mxu0 0
    %2291 = vmatprep.subr.bf16.mxu0 0
    %2292 = vmatpush1.bf16.xpose.msra.mxu0 0
    %2293 = vmatprep.subr.bf16.mxu0 0
    %2294 = vmatpush1.bf16.xpose.msra.mxu0 0
    %2295 = vmatprep.subr.bf16.mxu0 0
    %2296 = vmatpush1.bf16.xpose.msra.mxu0 0
    %2297 = vmatprep.subr.bf16.mxu0 0
    %2298 = vmatpush1.bf16.xpose.msra.mxu0 0
    %2299 = vmatprep.subr.bf16.mxu0 0
    %2300 = vmatpush1.bf16.xpose.msra.mxu0 0
    %2301 = vmatprep.subr.bf16.mxu0 0
    %2302 = vmatpush1.bf16.xpose.msra.mxu0 0
    %2303 = vmatprep.mubr.bf16.mxu0 0
    %2304 = vmatmul.mubr.bf16.gmra.mrb[0].mxu0 %v2269
    %v2305 = vpop.f32.mrb[0].mxu0
    %v2306 = vadd.f32 0.0, %v2305
    %v2307 = vpop.f32.mrb[0].mxu0
    %v2308 = vpop.f32.mrb[0].mxu0
    %v2309 = vpop.f32.mrb[0].mxu0
    %2310 = vdwg.mxu0
    %v2311 = vpack.c.bf16 %v2223, %v2180
    %v2312 = vpack.c.bf16 %v2306, %v2263
    %v2313 = vld [vmem:[%s5] sm:$0xf]
    %v2314 = vld [vmem:[%s5 + $0x4] sm:$0xf]
    %v2315 = vld [vmem:[%s5 + $0x8] sm:$0xf]
    %v2316 = vld [vmem:[%s5 + $0xc] sm:$0xf]
    %v2317 = vld [vmem:[%s6] sm:$0xff]
    %v2318 = vld [vmem:[%s6 + $0x8] sm:$0xff]
    %v2319 = vld [vmem:[%s6 + $0x10] sm:$0xff]
    %v2320 = vld [vmem:[%s6 + $0x18] sm:$0xff]
    %2322 = vset.pattern.permute.xlu0 0
    %2323 = vperm.xlu0 %2322, %v2317
    %v2324 = vpop.permute.xlu0 %2323
    %2327 = vset.pattern.permute.xlu0 0
    %2328 = vperm.xlu0 %2327, %v2318
    %v2329 = vpop.permute.xlu0 %2328
    %2332 = vset.pattern.permute.xlu0 0
    %2333 = vperm.xlu0 %2332, %v2319
    %v2334 = vpop.permute.xlu0 %2333
    %2337 = vset.pattern.permute.xlu0 0
    %2338 = vperm.xlu0 %2337, %v2320
    %v2339 = vpop.permute.xlu0 %2338
    %v2345 = vunpack.c.l.b16 %v2313
    %v2346 = vunpack.c.l.b16 %v2314
    %v2347 = vunpack.c.l.b16 %v2315
    %v2348 = vunpack.c.l.b16 %v2316
    %v2349 = vpack.c.b16 %v2346, %v2345
    %v2350 = vpack.c.b16 %v2348, %v2347
    %v2352 = vsel %vm667, %v2349, 0
    %v2355 = vsel %vm667, %v2350, 0
    %2357 = vmatprep.subr.bf16.mxu0 0
    %2358 = vmatpush1.bf16.msra.mxu0 %v2311
    %2359 = vmatprep.subr.bf16.mxu0 0
    %2360 = vmatpush1.bf16.msra.mxu0 %v2312
    %2361 = vmatprep.subr.bf16.mxu0 0
    %2362 = vmatpush1.bf16.msra.mxu0 0
    %2363 = vmatprep.subr.bf16.mxu0 0
    %2364 = vmatpush1.bf16.msra.mxu0 0
    %2365 = vmatprep.subr.bf16.mxu0 0
    %2366 = vmatpush1.bf16.msra.mxu0 0
    %2367 = vmatprep.subr.bf16.mxu0 0
    %2368 = vmatpush1.bf16.msra.mxu0 0
    %2369 = vmatprep.subr.bf16.mxu0 0
    %2370 = vmatpush1.bf16.msra.mxu0 0
    %2371 = vmatprep.subr.bf16.mxu0 0
    %2372 = vmatpush1.bf16.msra.mxu0 0
    %2373 = vmatprep.subr.bf16.mxu0 0
    %2374 = vmatpush1.bf16.msra.mxu0 0
    %2375 = vmatprep.subr.bf16.mxu0 0
    %2376 = vmatpush1.bf16.msra.mxu0 0
    %2377 = vmatprep.subr.bf16.mxu0 0
    %2378 = vmatpush1.bf16.msra.mxu0 0
    %2379 = vmatprep.subr.bf16.mxu0 0
    %2380 = vmatpush1.bf16.msra.mxu0 0
    %2381 = vmatprep.subr.bf16.mxu0 0
    %2382 = vmatpush1.bf16.msra.mxu0 0
    %2383 = vmatprep.subr.bf16.mxu0 0
    %2384 = vmatpush1.bf16.msra.mxu0 0
    %2385 = vmatprep.subr.bf16.mxu0 0
    %2386 = vmatpush1.bf16.msra.mxu0 0
    %2387 = vmatprep.subr.bf16.mxu0 0
    %2388 = vmatpush1.bf16.msra.mxu0 0
    %2389 = vmatprep.mubr.bf16.mxu0 0
    %2390 = vmatmul.mubr.bf16.gmra.mrb[0].mxu0 %v2352
    %v2391 = vpop.f32.mrb[0].mxu0
    %v2392 = vadd.f32 %v2324, %v2391
    %v2393 = vpop.f32.mrb[0].mxu0
    %v2394 = vpop.f32.mrb[0].mxu0
    %v2395 = vadd.f32 %v2329, %v2394
    %v2396 = vpop.f32.mrb[0].mxu0
    %2397 = vmatprep.mubr.bf16.mxu0 0
    %2398 = vmatmul.mubr.bf16.gmra.mrb[0].mxu0 %v2355
    %v2399 = vpop.f32.mrb[0].mxu0
    %v2400 = vadd.f32 %v2334, %v2399
    %v2401 = vpop.f32.mrb[0].mxu0
    %v2402 = vpop.f32.mrb[0].mxu0
    %v2403 = vadd.f32 %v2339, %v2402
    %v2404 = vpop.f32.mrb[0].mxu0
    %2405 = vdwg.mxu0
    %v2406 = vadd.f32 %v2392, %v66
    %v2407 = vadd.f32 %v2395, %v67
    %v2408 = vadd.f32 %v2400, %v68
    %v2409 = vadd.f32 %v2403, %v69
    %2410 = vst.msk [vmem:[#allocation2] sm:$0xff] %vm65, %v2406
    %2411 = vst.msk [vmem:[#allocation2 + $0x8] sm:$0xff] %vm65, %v2407
    %2412 = vst.msk [vmem:[#allocation2 + $0x10] sm:$0xff] %vm65, %v2408
    %2413 = vst.msk [vmem:[#allocation2 + $0x18] sm:$0xff] %vm65, %v2409
    %2418 = vrot.lane.b32.xlu0 %v2406, 64
    %v2419 = vpop.permute.xlu0 %2418
    %2420 = vrot.lane.b32.xlu0 %v2407, 64
    %v2421 = vpop.permute.xlu0 %2420
    %2422 = vrot.lane.b32.xlu0 %v2408, 64
    %v2423 = vpop.permute.xlu0 %2422
    %2424 = vrot.lane.b32.xlu0 %v2409, 64
    %v2425 = vpop.permute.xlu0 %2424
    %s2430 = scalar_lea.vmem [#allocation2], 32
    %2431 = vst.msk [vmem:[%s2430] sm:$0xff] %vm65, %v2419
    %2432 = vst.msk [vmem:[%s2430 + $0x8] sm:$0xff] %vm65, %v2421
    %2433 = vst.msk [vmem:[%s2430 + $0x10] sm:$0xff] %vm65, %v2423
    %2434 = vst.msk [vmem:[%s2430 + $0x18] sm:$0xff] %vm65, %v2425
    // Predicated region
    $region46: #{tpu_custom_call.1} parent=1 // pred_check
      _
    $region47: #{tpu_custom_call.1} parent=1 // pred_check_branch
      %2436 = sbr.rel (0) target = $region49
    $region48: #{tpu_custom_call.1} parent=1 // pred_region
      %s2438 = ssub.s32 1024, 1024
      %2439 = vsyncadd [#allocation3], %s2438
      %s2440 = sshll.u32 [#allocation2], 4
      %s2441 = int_to_ptr.vmem [resolvable:$true] %s2440
      %2446 = dma.vmem_to_hbm [thread:$0]  %s2441, 1024, %s11, [#allocation3], 128, 128, 8
    $region49: #{tpu_custom_call.1} parent=1 // pred_fallthru
      _
    // Predicated region
    $region50: #{tpu_custom_call.1} parent=1 // pred_check
      _
    $region51: #{tpu_custom_call.1} parent=1 // pred_check_branch
      %2448 = sbr.rel (0) target = $region53
    $region52: #{tpu_custom_call.1} parent=1 // pred_region
      %2449 = dma.done [#allocation3], 1024
    $region53: #{tpu_custom_call.1} parent=1 // pred_fallthru
      _
    %2450 = vsyncpa [#allocation3], 1

</llo_original>
